<compile_context>
chip_gen: v7x
topology: tpu7x:2x2x1
jax: 0.10.0
libtpu: 0.0.40
codegen_flags: <defaults>
</compile_context>

<pallas_src>
import jax
import jax.numpy as jnp
from jax.experimental import pallas as pl
from jax.experimental.pallas import tpu as pltpu

# Small, module-consistent sizes: batch=2, seq=8, width=32, 4 heads, 2 layers,
# projection dim 64.
B, S, D, H, L, P = 2, 8, 32, 4, 2, 64
HD = D // H
EPS = 1e-5
NEG_INF = -1e30


def _layernorm(x, g, b):
    mu = jnp.mean(x, axis=-1, keepdims=True)
    var = jnp.mean((x - mu) ** 2, axis=-1, keepdims=True)
    return (x - mu) * jax.lax.rsqrt(var + EPS) * g + b


# ------------------------------ fused kernel ---------------------------------

def text_encoder_kernel(x0_ref, pos_ref, bias_ref, eot_ref,        # per-batch / shared
                        ln1g, ln1b, wqkv, bqkv, wo, bo,            # streamed per-layer
                        ln2g, ln2b, w1, b1, w2, b2,
                        lnfg, lnfb, proj_ref,                      # final LN + projection
                        o_ref,                                     # (1, P) output block
                        x_scr):                                    # VMEM scratch (S, D)
    l = pl.program_id(1)
    scale = 1.0 / float(HD) ** 0.5

    # ---- layer 0 only: positional embedding add (pos broadcast in-kernel) ----
    @pl.when(l == 0)
    def _():
        x_scr[...] = x0_ref[...] + pos_ref[...]                    # (S, D)

    x = x_scr[...]

    # ---- pre-LN multi-head causal self-attention ----
    h = _layernorm(x, ln1g[...], ln1b[...])
    qkv = jnp.dot(h, wqkv[...], preferred_element_type=jnp.float32) + bqkv[...]
    q = qkv[:, :D] * scale                                         # fold 1/sqrt(HD)
    k = qkv[:, D:2 * D]
    v = qkv[:, 2 * D:]

    # per-head score tiles, sublane-stacked -> ONE fused masked softmax
    sc = jnp.concatenate(
        [jax.lax.dot_general(q[:, hh * HD:(hh + 1) * HD],
                             k[:, hh * HD:(hh + 1) * HD],
                             (((1,), (1,)), ((), ())),
                             preferred_element_type=jnp.float32)
         for hh in range(H)], axis=0)                              # (H*S, S)
    sc = sc + bias_ref[...]                                        # additive causal bias
    m = jnp.max(sc, axis=-1, keepdims=True)
    e = jnp.exp(sc - m)
    p = e * pl.reciprocal(jnp.sum(e, axis=-1, keepdims=True), approx=True)

    # per-head PV tiles assembled along lanes -> ONE out_proj matmul
    attn = jnp.concatenate(
        [jnp.dot(p[hh * S:(hh + 1) * S, :], v[:, hh * HD:(hh + 1) * HD],
                 preferred_element_type=jnp.float32)
         for hh in range(H)], axis=1)                              # (S, D)
    x = x + jnp.dot(attn, wo[...], preferred_element_type=jnp.float32) + bo[...]

    # ---- pre-LN MLP (QuickGELU) ----
    h2 = _layernorm(x, ln2g[...], ln2b[...])
    h2 = jnp.dot(h2, w1[...], preferred_element_type=jnp.float32) + b1[...]
    h2 = h2 * jax.nn.sigmoid(1.702 * h2)
    x = x + jnp.dot(h2, w2[...], preferred_element_type=jnp.float32) + b2[...]

    x_scr[...] = x

    # ---- last layer only: EOT one-hot gather + ln_final + text_projection ----
    @pl.when(l == pl.num_programs(1) - 1)
    def _():
        xr = jnp.dot(eot_ref[...], x, preferred_element_type=jnp.float32)   # (1, D)
        xn = _layernorm(xr, lnfg[...], lnfb[...])
        o_ref[...] = jnp.dot(xn, proj_ref[...], preferred_element_type=jnp.float32)


# -------------------------------- wrapper -------------------------------------

def text_encoder(prompts, tokenized_prompts, params):
    # scalar glue: EOT position per prompt -> one-hot row selector
    eot_idx = jnp.argmax(tokenized_prompts, axis=-1)               # (B,)
    onehot = jax.nn.one_hot(eot_idx, S, dtype=jnp.float32).reshape(B, 1, S)

    # additive causal mask bias, tiled over heads (sublane-stacked scores)
    causal = jnp.tril(jnp.ones((S, S), dtype=bool))
    bias = jnp.tile(jnp.where(causal, 0.0, NEG_INF).astype(jnp.float32), (H, 1))

    # stack per-layer weights with a leading L axis (one array per weight kind)
    stacked = [jnp.stack([lp[i] for lp in params["layers"]], axis=0)
               for i in range(12)]

    in_specs = (
        [pl.BlockSpec((None, S, D), lambda b, l: (b, 0, 0)),       # prompts
         pl.BlockSpec((S, D), lambda b, l: (0, 0)),                # positional embedding
         pl.BlockSpec((H * S, S), lambda b, l: (0, 0)),            # causal mask bias
         pl.BlockSpec((None, 1, S), lambda b, l: (b, 0, 0))]       # EOT one-hot
        + [pl.BlockSpec((None,) + w.shape[1:], lambda b, l: (l, 0, 0))   # streamed weights
           for w in stacked]
        + [pl.BlockSpec((1, D), lambda b, l: (0, 0)),              # ln_final gamma
           pl.BlockSpec((1, D), lambda b, l: (0, 0)),              # ln_final beta
           pl.BlockSpec((D, P), lambda b, l: (0, 0))]              # text_projection
    )

    flops_layer = (2 * S * D * 3 * D          # qkv projection
                   + 2 * 2 * S * S * D        # scores + pv
                   + 2 * S * D * D            # out_proj
                   + 2 * 2 * S * D * 4 * D)   # mlp
    cost = pl.CostEstimate(
        flops=int(B * (L * flops_layer + 2 * S * D + 2 * D * P)),
        transcendentals=int(B * L * (H * S * S + S * 4 * D)),
        bytes_accessed=int(4 * (2 * B * S * D
                                + B * sum(int(w.size) for w in stacked)
                                + H * S * S + B * S + 2 * D + D * P + B * P)))

    out = pl.pallas_call(
        text_encoder_kernel,
        out_shape=jax.ShapeDtypeStruct((B, 1, P), jnp.float32),
        grid=(B, L),
        in_specs=in_specs,
        out_specs=pl.BlockSpec((None, 1, P), lambda b, l: (b, 0, 0)),
        scratch_shapes=[pltpu.VMEM((S, D), jnp.float32)],
        compiler_params=pltpu.CompilerParams(
            dimension_semantics=("parallel", "arbitrary"),
            vmem_limit_bytes=32 * 1024 * 1024),
        cost_estimate=cost,
    )(prompts, params["pos"], bias, onehot, *stacked,
      params["ln_f_g"], params["ln_f_b"], params["proj"])
    return out.reshape(B, P)


# -------------------------- pure-JAX reference --------------------------------

def reference(prompts, tokenized_prompts, params):
    x = prompts + params["pos"]
    for (ln1g, ln1b, wqkv, bqkv, wo, bo, ln2g, ln2b, w1, b1, w2, b2) in params["layers"]:
        h = _layernorm(x, ln1g, ln1b)
        qkv = h @ wqkv + bqkv
        q, k, v = jnp.split(qkv, 3, axis=-1)
        q = q.reshape(B, S, H, HD)
        k = k.reshape(B, S, H, HD)
        v = v.reshape(B, S, H, HD)
        sc = jnp.einsum("bqhd,bkhd->bhqk", q, k) / float(HD) ** 0.5
        msk = jnp.tril(jnp.ones((S, S), bool))
        sc = jnp.where(msk, sc, NEG_INF)
        pa = jax.nn.softmax(sc, axis=-1)
        at = jnp.einsum("bhqk,bkhd->bqhd", pa, v).reshape(B, S, D)
        x = x + at @ wo + bo
        h2 = _layernorm(x, ln2g, ln2b)
        h2 = h2 @ w1 + b1
        h2 = h2 * jax.nn.sigmoid(1.702 * h2)
        x = x + h2 @ w2 + b2
    eot = jnp.argmax(tokenized_prompts, axis=-1)
    xr = x[jnp.arange(B), eot]
    xr = _layernorm(xr, params["ln_f_g"], params["ln_f_b"])
    return xr @ params["proj"]


# ------------------------------- setup ----------------------------------------

def init_params(key):
    keys = jax.random.split(key, 2 + L)
    params = {"pos": 0.01 * jax.random.normal(keys[0], (S, D), jnp.float32)}
    layers = []
    for l in range(L):
        lk = jax.random.split(keys[1 + l], 4)
        layers.append((
            jnp.ones((1, D), jnp.float32), jnp.zeros((1, D), jnp.float32),   # ln_1
            0.02 * jax.random.normal(lk[0], (D, 3 * D), jnp.float32),         # in_proj W
            jnp.zeros((1, 3 * D), jnp.float32),                               # in_proj b
            0.02 * jax.random.normal(lk[1], (D, D), jnp.float32),             # out_proj W
            jnp.zeros((1, D), jnp.float32),                                   # out_proj b
            jnp.ones((1, D), jnp.float32), jnp.zeros((1, D), jnp.float32),    # ln_2
            0.02 * jax.random.normal(lk[2], (D, 4 * D), jnp.float32),         # mlp c_fc
            jnp.zeros((1, 4 * D), jnp.float32),
            0.02 * jax.random.normal(lk[3], (4 * D, D), jnp.float32),         # mlp c_proj
            jnp.zeros((1, D), jnp.float32),
        ))
    params["layers"] = layers
    params["ln_f_g"] = jnp.ones((1, D), jnp.float32)
    params["ln_f_b"] = jnp.zeros((1, D), jnp.float32)
    params["proj"] = 0.02 * jax.random.normal(keys[1 + L], (D, P), jnp.float32)
    return params


if __name__ == "__main__":
    key = jax.random.PRNGKey(0)
    kparam, kprompt, ktok = jax.random.split(key, 3)
    params = init_params(kparam)

    prompts = jax.random.normal(kprompt, (B, S, D), jnp.float32)
    tokenized_prompts = jax.random.randint(ktok, (B, S), 1, 100, dtype=jnp.int32)
    # place an "EOT" (max) token at a distinct position per prompt
    eot_pos = jnp.array([5, 3], jnp.int32)
    tokenized_prompts = tokenized_prompts.at[jnp.arange(B), eot_pos].set(49407)

    out = text_encoder(prompts, tokenized_prompts, params)
    out = jax.block_until_ready(out)

    ref = reference(prompts, tokenized_prompts, params)
    assert out.shape == (B, P), out.shape
    assert jnp.allclose(out, ref, atol=2e-3, rtol=2e-3), float(jnp.max(jnp.abs(out - ref)))

    print("KERNEL_OK")
</pallas_src>

<mosaic_0001>
module attributes {stable_mosaic.version = 11 : i64} {
  func.func @text_encoder_kernel(%arg0: i32, %arg1: i32, %arg2: memref<1x8x32xf32, #tpu.memory_space<vmem>>, %arg3: memref<8x32xf32, #tpu.memory_space<vmem>>, %arg4: memref<32x8xf32, #tpu.memory_space<vmem>>, %arg5: memref<1x1x8xf32, #tpu.memory_space<vmem>>, %arg6: memref<1x1x32xf32, #tpu.memory_space<vmem>>, %arg7: memref<1x1x32xf32, #tpu.memory_space<vmem>>, %arg8: memref<1x32x96xf32, #tpu.memory_space<vmem>>, %arg9: memref<1x1x96xf32, #tpu.memory_space<vmem>>, %arg10: memref<1x32x32xf32, #tpu.memory_space<vmem>>, %arg11: memref<1x1x32xf32, #tpu.memory_space<vmem>>, %arg12: memref<1x1x32xf32, #tpu.memory_space<vmem>>, %arg13: memref<1x1x32xf32, #tpu.memory_space<vmem>>, %arg14: memref<1x32x128xf32, #tpu.memory_space<vmem>>, %arg15: memref<1x1x128xf32, #tpu.memory_space<vmem>>, %arg16: memref<1x128x32xf32, #tpu.memory_space<vmem>>, %arg17: memref<1x1x32xf32, #tpu.memory_space<vmem>>, %arg18: memref<1x32xf32, #tpu.memory_space<vmem>>, %arg19: memref<1x32xf32, #tpu.memory_space<vmem>>, %arg20: memref<32x64xf32, #tpu.memory_space<vmem>>, %arg21: memref<1x1x64xf32, #tpu.memory_space<vmem>>, %arg22: memref<8x32xf32, #tpu.memory_space<vmem>>) attributes {dimension_semantics = [#tpu.dimension_semantics<parallel>, #tpu.dimension_semantics<arbitrary>], iteration_bounds = array<i64: 2, 2>, scalar_prefetch = 0 : i64, scratch_operands = 1 : i64, tpu.core_type = #tpu.core_type<tc>, window_params = [{transform_indices = @transform_0, window_bounds = array<i64: 1, 8, 32>}, {pipeline_mode = #tpu.pipeline_mode<synchronous>, transform_indices = @transform_1, window_bounds = array<i64: 8, 32>}, {pipeline_mode = #tpu.pipeline_mode<synchronous>, transform_indices = @transform_2, window_bounds = array<i64: 32, 8>}, {transform_indices = @transform_3, window_bounds = array<i64: 1, 1, 8>}, {transform_indices = @transform_4, window_bounds = array<i64: 1, 1, 32>}, {transform_indices = @transform_5, window_bounds = array<i64: 1, 1, 32>}, {transform_indices = @transform_6, window_bounds = array<i64: 1, 32, 96>}, {transform_indices = @transform_7, window_bounds = array<i64: 1, 1, 96>}, {transform_indices = @transform_8, window_bounds = array<i64: 1, 32, 32>}, {transform_indices = @transform_9, window_bounds = array<i64: 1, 1, 32>}, {transform_indices = @transform_10, window_bounds = array<i64: 1, 1, 32>}, {transform_indices = @transform_11, window_bounds = array<i64: 1, 1, 32>}, {transform_indices = @transform_12, window_bounds = array<i64: 1, 32, 128>}, {transform_indices = @transform_13, window_bounds = array<i64: 1, 1, 128>}, {transform_indices = @transform_14, window_bounds = array<i64: 1, 128, 32>}, {transform_indices = @transform_15, window_bounds = array<i64: 1, 1, 32>}, {pipeline_mode = #tpu.pipeline_mode<synchronous>, transform_indices = @transform_16, window_bounds = array<i64: 1, 32>}, {pipeline_mode = #tpu.pipeline_mode<synchronous>, transform_indices = @transform_17, window_bounds = array<i64: 1, 32>}, {pipeline_mode = #tpu.pipeline_mode<synchronous>, transform_indices = @transform_18, window_bounds = array<i64: 32, 64>}, {transform_indices = @transform_19, window_bounds = array<i64: 1, 1, 64>}]} {
    %c0_i32 = arith.constant 0 : i32
    %0 = arith.cmpi eq, %arg1, %c0_i32 : i32
    %1 = arith.extui %0 : i1 to i32
    %c0_i32_0 = arith.constant 0 : i32
    %2 = arith.cmpi ne, %1, %c0_i32_0 : i32
    scf.if %2 {
      %c0_69 = arith.constant 0 : index
      %c0_70 = arith.constant 0 : index
      %c0_71 = arith.constant 0 : index
      %141 = vector.load %arg2[%c0_69, %c0_70, %c0_71] : memref<1x8x32xf32, #tpu.memory_space<vmem>>, vector<1x8x32xf32>
      %142 = vector.shape_cast %141 : vector<1x8x32xf32> to vector<8x32xf32>
      %c0_72 = arith.constant 0 : index
      %c0_73 = arith.constant 0 : index
      %143 = vector.load %arg3[%c0_72, %c0_73] : memref<8x32xf32, #tpu.memory_space<vmem>>, vector<8x32xf32>
      %144 = arith.addf %142, %143 : vector<8x32xf32>
      %c0_74 = arith.constant 0 : index
      %c0_75 = arith.constant 0 : index
      %145 = vector.load %arg22[%c0_74, %c0_75] : memref<8x32xf32, #tpu.memory_space<vmem>>, vector<8x32xf32>
      tpu.vector_store %arg22[%c0_74, %c0_75], %144 {strides = array<i32>} : memref<8x32xf32, #tpu.memory_space<vmem>>, vector<8x32xf32>,
    } else {
    }
    %c0 = arith.constant 0 : index
    %c0_1 = arith.constant 0 : index
    %3 = vector.load %arg22[%c0, %c0_1] : memref<8x32xf32, #tpu.memory_space<vmem>>, vector<8x32xf32>
    %c0_2 = arith.constant 0 : index
    %c0_3 = arith.constant 0 : index
    %c0_4 = arith.constant 0 : index
    %4 = vector.load %arg6[%c0_2, %c0_3, %c0_4] : memref<1x1x32xf32, #tpu.memory_space<vmem>>, vector<1x1x32xf32>
    %5 = vector.shape_cast %4 : vector<1x1x32xf32> to vector<1x32xf32>
    %c0_5 = arith.constant 0 : index
    %c0_6 = arith.constant 0 : index
    %c0_7 = arith.constant 0 : index
    %6 = vector.load %arg7[%c0_5, %c0_6, %c0_7] : memref<1x1x32xf32, #tpu.memory_space<vmem>>, vector<1x1x32xf32>
    %7 = vector.shape_cast %6 : vector<1x1x32xf32> to vector<1x32xf32>
    %cst = arith.constant dense<0.000000e+00> : vector<8xf32>
    %8 = vector.multi_reduction <add>, %3, %cst [1] : vector<8x32xf32> to vector<8xf32>
    %9 = vector.shape_cast %8 : vector<8xf32> to vector<8x1xf32>
    %cst_8 = arith.constant 3.200000e+01 : f32
    %10 = vector.broadcast %cst_8 : f32 to vector<8x1xf32>
    %11 = arith.divf %9, %10 : vector<8x1xf32>
    %12 = vector.broadcast %11 : vector<8x1xf32> to vector<8x32xf32>
    %13 = arith.subf %3, %12 : vector<8x32xf32>
    %14 = arith.mulf %13, %13 : vector<8x32xf32>
    %cst_9 = arith.constant dense<0.000000e+00> : vector<8xf32>
    %15 = vector.multi_reduction <add>, %14, %cst_9 [1] : vector<8x32xf32> to vector<8xf32>
    %16 = vector.shape_cast %15 : vector<8xf32> to vector<8x1xf32>
    %cst_10 = arith.constant 3.200000e+01 : f32
    %17 = vector.broadcast %cst_10 : f32 to vector<8x1xf32>
    %18 = arith.divf %16, %17 : vector<8x1xf32>
    %19 = vector.broadcast %11 : vector<8x1xf32> to vector<8x32xf32>
    %20 = arith.subf %3, %19 : vector<8x32xf32>
    %cst_11 = arith.constant 9.99999974E-6 : f32
    %21 = vector.broadcast %cst_11 : f32 to vector<8x1xf32>
    %22 = arith.addf %18, %21 : vector<8x1xf32>
    %23 = math.rsqrt %22 : vector<8x1xf32>
    %24 = vector.broadcast %23 : vector<8x1xf32> to vector<8x32xf32>
    %25 = arith.mulf %20, %24 : vector<8x32xf32>
    %26 = vector.broadcast %5 : vector<1x32xf32> to vector<8x32xf32>
    %27 = arith.mulf %25, %26 : vector<8x32xf32>
    %28 = vector.broadcast %7 : vector<1x32xf32> to vector<8x32xf32>
    %29 = arith.addf %27, %28 : vector<8x32xf32>
    %c0_12 = arith.constant 0 : index
    %c0_13 = arith.constant 0 : index
    %c0_14 = arith.constant 0 : index
    %30 = vector.load %arg8[%c0_12, %c0_13, %c0_14] : memref<1x32x96xf32, #tpu.memory_space<vmem>>, vector<1x32x96xf32>
    %31 = vector.shape_cast %30 : vector<1x32x96xf32> to vector<32x96xf32>
    %cst_15 = arith.constant dense<0.000000e+00> : vector<8x96xf32>
    %32 = tpu.matmul %29, %31, %cst_15 {dimension_numbers = #tpu.dot_dimension_numbers<[1], [0], [0], [1], [0, 0, 1, 1], [], []>} : vector<8x32xf32>, vector<32x96xf32>, vector<8x96xf32> -> vector<8x96xf32>
    %c0_16 = arith.constant 0 : index
    %c0_17 = arith.constant 0 : index
    %c0_18 = arith.constant 0 : index
    %33 = vector.load %arg9[%c0_16, %c0_17, %c0_18] : memref<1x1x96xf32, #tpu.memory_space<vmem>>, vector<1x1x96xf32>
    %34 = vector.shape_cast %33 : vector<1x1x96xf32> to vector<1x96xf32>
    %35 = vector.broadcast %34 : vector<1x96xf32> to vector<8x96xf32>
    %36 = arith.addf %32, %35 : vector<8x96xf32>
    %37 = vector.extract_strided_slice %36 {offsets = [0, 0], sizes = [8, 32], strides = [1, 1]} : vector<8x96xf32> to vector<8x32xf32>
    %cst_19 = arith.constant 0.353553385 : f32
    %38 = vector.broadcast %cst_19 : f32 to vector<8x32xf32>
    %39 = arith.mulf %37, %38 : vector<8x32xf32>
    %40 = vector.extract_strided_slice %36 {offsets = [0, 32], sizes = [8, 32], strides = [1, 1]} : vector<8x96xf32> to vector<8x32xf32>
    %41 = vector.extract_strided_slice %36 {offsets = [0, 64], sizes = [8, 32], strides = [1, 1]} : vector<8x96xf32> to vector<8x32xf32>
    %42 = vector.extract_strided_slice %39 {offsets = [0, 0], sizes = [8, 8], strides = [1, 1]} : vector<8x32xf32> to vector<8x8xf32>
    %43 = vector.extract_strided_slice %40 {offsets = [0, 0], sizes = [8, 8], strides = [1, 1]} : vector<8x32xf32> to vector<8x8xf32>
    %cst_20 = arith.constant dense<0.000000e+00> : vector<8x8xf32>
    %44 = tpu.matmul %42, %43, %cst_20 {dimension_numbers = #tpu.dot_dimension_numbers<[1], [1], [0], [0], [0, 0, 1, 0], [], []>} : vector<8x8xf32>, vector<8x8xf32>, vector<8x8xf32> -> vector<8x8xf32>
    %45 = vector.extract_strided_slice %39 {offsets = [0, 8], sizes = [8, 8], strides = [1, 1]} : vector<8x32xf32> to vector<8x8xf32>
    %46 = vector.extract_strided_slice %40 {offsets = [0, 8], sizes = [8, 8], strides = [1, 1]} : vector<8x32xf32> to vector<8x8xf32>
    %cst_21 = arith.constant dense<0.000000e+00> : vector<8x8xf32>
    %47 = tpu.matmul %45, %46, %cst_21 {dimension_numbers = #tpu.dot_dimension_numbers<[1], [1], [0], [0], [0, 0, 1, 0], [], []>} : vector<8x8xf32>, vector<8x8xf32>, vector<8x8xf32> -> vector<8x8xf32>
    %48 = vector.extract_strided_slice %39 {offsets = [0, 16], sizes = [8, 8], strides = [1, 1]} : vector<8x32xf32> to vector<8x8xf32>
    %49 = vector.extract_strided_slice %40 {offsets = [0, 16], sizes = [8, 8], strides = [1, 1]} : vector<8x32xf32> to vector<8x8xf32>
    %cst_22 = arith.constant dense<0.000000e+00> : vector<8x8xf32>
    %50 = tpu.matmul %48, %49, %cst_22 {dimension_numbers = #tpu.dot_dimension_numbers<[1], [1], [0], [0], [0, 0, 1, 0], [], []>} : vector<8x8xf32>, vector<8x8xf32>, vector<8x8xf32> -> vector<8x8xf32>
    %51 = vector.extract_strided_slice %39 {offsets = [0, 24], sizes = [8, 8], strides = [1, 1]} : vector<8x32xf32> to vector<8x8xf32>
    %52 = vector.extract_strided_slice %40 {offsets = [0, 24], sizes = [8, 8], strides = [1, 1]} : vector<8x32xf32> to vector<8x8xf32>
    %cst_23 = arith.constant dense<0.000000e+00> : vector<8x8xf32>
    %53 = tpu.matmul %51, %52, %cst_23 {dimension_numbers = #tpu.dot_dimension_numbers<[1], [1], [0], [0], [0, 0, 1, 0], [], []>} : vector<8x8xf32>, vector<8x8xf32>, vector<8x8xf32> -> vector<8x8xf32>
    %54 = tpu.concatenate %44, %47, %50, %53 in 0 : vector<8x8xf32>, vector<8x8xf32>, vector<8x8xf32>, vector<8x8xf32> -> vector<32x8xf32>
    %c0_24 = arith.constant 0 : index
    %c0_25 = arith.constant 0 : index
    %55 = vector.load %arg4[%c0_24, %c0_25] : memref<32x8xf32, #tpu.memory_space<vmem>>, vector<32x8xf32>
    %56 = arith.addf %54, %55 : vector<32x8xf32>
    %cst_26 = arith.constant dense<0xFF800000> : vector<32xf32>
    %57 = vector.multi_reduction <maximumf>, %56, %cst_26 [1] : vector<32x8xf32> to vector<32xf32>
    %58 = vector.shape_cast %57 : vector<32xf32> to vector<32x1xf32>
    %59 = vector.broadcast %58 : vector<32x1xf32> to vector<32x8xf32>
    %60 = arith.subf %56, %59 : vector<32x8xf32>
    %61 = math.exp %60 : vector<32x8xf32>
    %cst_27 = arith.constant dense<0.000000e+00> : vector<32xf32>
    %62 = vector.multi_reduction <add>, %61, %cst_27 [1] : vector<32x8xf32> to vector<32xf32>
    %63 = vector.shape_cast %62 : vector<32xf32> to vector<32x1xf32>
    %64 = tpu.reciprocal %63 {approx = true} : vector<32x1xf32> -> vector<32x1xf32>
    %65 = vector.broadcast %64 : vector<32x1xf32> to vector<32x8xf32>
    %66 = arith.mulf %61, %65 : vector<32x8xf32>
    %67 = vector.extract_strided_slice %66 {offsets = [0, 0], sizes = [8, 8], strides = [1, 1]} : vector<32x8xf32> to vector<8x8xf32>
    %68 = vector.extract_strided_slice %41 {offsets = [0, 0], sizes = [8, 8], strides = [1, 1]} : vector<8x32xf32> to vector<8x8xf32>
    %cst_28 = arith.constant dense<0.000000e+00> : vector<8x8xf32>
    %69 = tpu.matmul %67, %68, %cst_28 {dimension_numbers = #tpu.dot_dimension_numbers<[1], [0], [0], [1], [0, 0, 1, 1], [], []>} : vector<8x8xf32>, vector<8x8xf32>, vector<8x8xf32> -> vector<8x8xf32>
    %70 = vector.extract_strided_slice %66 {offsets = [8, 0], sizes = [8, 8], strides = [1, 1]} : vector<32x8xf32> to vector<8x8xf32>
    %71 = vector.extract_strided_slice %41 {offsets = [0, 8], sizes = [8, 8], strides = [1, 1]} : vector<8x32xf32> to vector<8x8xf32>
    %cst_29 = arith.constant dense<0.000000e+00> : vector<8x8xf32>
    %72 = tpu.matmul %70, %71, %cst_29 {dimension_numbers = #tpu.dot_dimension_numbers<[1], [0], [0], [1], [0, 0, 1, 1], [], []>} : vector<8x8xf32>, vector<8x8xf32>, vector<8x8xf32> -> vector<8x8xf32>
    %73 = vector.extract_strided_slice %66 {offsets = [16, 0], sizes = [8, 8], strides = [1, 1]} : vector<32x8xf32> to vector<8x8xf32>
    %74 = vector.extract_strided_slice %41 {offsets = [0, 16], sizes = [8, 8], strides = [1, 1]} : vector<8x32xf32> to vector<8x8xf32>
    %cst_30 = arith.constant dense<0.000000e+00> : vector<8x8xf32>
    %75 = tpu.matmul %73, %74, %cst_30 {dimension_numbers = #tpu.dot_dimension_numbers<[1], [0], [0], [1], [0, 0, 1, 1], [], []>} : vector<8x8xf32>, vector<8x8xf32>, vector<8x8xf32> -> vector<8x8xf32>
    %76 = vector.extract_strided_slice %66 {offsets = [24, 0], sizes = [8, 8], strides = [1, 1]} : vector<32x8xf32> to vector<8x8xf32>
    %77 = vector.extract_strided_slice %41 {offsets = [0, 24], sizes = [8, 8], strides = [1, 1]} : vector<8x32xf32> to vector<8x8xf32>
    %cst_31 = arith.constant dense<0.000000e+00> : vector<8x8xf32>
    %78 = tpu.matmul %76, %77, %cst_31 {dimension_numbers = #tpu.dot_dimension_numbers<[1], [0], [0], [1], [0, 0, 1, 1], [], []>} : vector<8x8xf32>, vector<8x8xf32>, vector<8x8xf32> -> vector<8x8xf32>
    %79 = tpu.concatenate %69, %72, %75, %78 in 1 : vector<8x8xf32>, vector<8x8xf32>, vector<8x8xf32>, vector<8x8xf32> -> vector<8x32xf32>
    %c0_32 = arith.constant 0 : index
    %c0_33 = arith.constant 0 : index
    %c0_34 = arith.constant 0 : index
    %80 = vector.load %arg10[%c0_32, %c0_33, %c0_34] : memref<1x32x32xf32, #tpu.memory_space<vmem>>, vector<1x32x32xf32>
    %81 = vector.shape_cast %80 : vector<1x32x32xf32> to vector<32x32xf32>
    %cst_35 = arith.constant dense<0.000000e+00> : vector<8x32xf32>
    %82 = tpu.matmul %79, %81, %cst_35 {dimension_numbers = #tpu.dot_dimension_numbers<[1], [0], [0], [1], [0, 0, 1, 1], [], []>} : vector<8x32xf32>, vector<32x32xf32>, vector<8x32xf32> -> vector<8x32xf32>
    %83 = arith.addf %3, %82 : vector<8x32xf32>
    %c0_36 = arith.constant 0 : index
    %c0_37 = arith.constant 0 : index
    %c0_38 = arith.constant 0 : index
    %84 = vector.load %arg11[%c0_36, %c0_37, %c0_38] : memref<1x1x32xf32, #tpu.memory_space<vmem>>, vector<1x1x32xf32>
    %85 = vector.shape_cast %84 : vector<1x1x32xf32> to vector<1x32xf32>
    %86 = vector.broadcast %85 : vector<1x32xf32> to vector<8x32xf32>
    %87 = arith.addf %83, %86 : vector<8x32xf32>
    %c0_39 = arith.constant 0 : index
    %c0_40 = arith.constant 0 : index
    %c0_41 = arith.constant 0 : index
    %88 = vector.load %arg12[%c0_39, %c0_40, %c0_41] : memref<1x1x32xf32, #tpu.memory_space<vmem>>, vector<1x1x32xf32>
    %89 = vector.shape_cast %88 : vector<1x1x32xf32> to vector<1x32xf32>
    %c0_42 = arith.constant 0 : index
    %c0_43 = arith.constant 0 : index
    %c0_44 = arith.constant 0 : index
    %90 = vector.load %arg13[%c0_42, %c0_43, %c0_44] : memref<1x1x32xf32, #tpu.memory_space<vmem>>, vector<1x1x32xf32>
    %91 = vector.shape_cast %90 : vector<1x1x32xf32> to vector<1x32xf32>
    %cst_45 = arith.constant dense<0.000000e+00> : vector<8xf32>
    %92 = vector.multi_reduction <add>, %87, %cst_45 [1] : vector<8x32xf32> to vector<8xf32>
    %93 = vector.shape_cast %92 : vector<8xf32> to vector<8x1xf32>
    %cst_46 = arith.constant 3.200000e+01 : f32
    %94 = vector.broadcast %cst_46 : f32 to vector<8x1xf32>
    %95 = arith.divf %93, %94 : vector<8x1xf32>
    %96 = vector.broadcast %95 : vector<8x1xf32> to vector<8x32xf32>
    %97 = arith.subf %87, %96 : vector<8x32xf32>
    %98 = arith.mulf %97, %97 : vector<8x32xf32>
    %cst_47 = arith.constant dense<0.000000e+00> : vector<8xf32>
    %99 = vector.multi_reduction <add>, %98, %cst_47 [1] : vector<8x32xf32> to vector<8xf32>
    %100 = vector.shape_cast %99 : vector<8xf32> to vector<8x1xf32>
    %cst_48 = arith.constant 3.200000e+01 : f32
    %101 = vector.broadcast %cst_48 : f32 to vector<8x1xf32>
    %102 = arith.divf %100, %101 : vector<8x1xf32>
    %103 = vector.broadcast %95 : vector<8x1xf32> to vector<8x32xf32>
    %104 = arith.subf %87, %103 : vector<8x32xf32>
    %cst_49 = arith.constant 9.99999974E-6 : f32
    %105 = vector.broadcast %cst_49 : f32 to vector<8x1xf32>
    %106 = arith.addf %102, %105 : vector<8x1xf32>
    %107 = math.rsqrt %106 : vector<8x1xf32>
    %108 = vector.broadcast %107 : vector<8x1xf32> to vector<8x32xf32>
    %109 = arith.mulf %104, %108 : vector<8x32xf32>
    %110 = vector.broadcast %89 : vector<1x32xf32> to vector<8x32xf32>
    %111 = arith.mulf %109, %110 : vector<8x32xf32>
    %112 = vector.broadcast %91 : vector<1x32xf32> to vector<8x32xf32>
    %113 = arith.addf %111, %112 : vector<8x32xf32>
    %c0_50 = arith.constant 0 : index
    %c0_51 = arith.constant 0 : index
    %c0_52 = arith.constant 0 : index
    %114 = vector.load %arg14[%c0_50, %c0_51, %c0_52] : memref<1x32x128xf32, #tpu.memory_space<vmem>>, vector<1x32x128xf32>
    %115 = vector.shape_cast %114 : vector<1x32x128xf32> to vector<32x128xf32>
    %cst_53 = arith.constant dense<0.000000e+00> : vector<8x128xf32>
    %116 = tpu.matmul %113, %115, %cst_53 {dimension_numbers = #tpu.dot_dimension_numbers<[1], [0], [0], [1], [0, 0, 1, 1], [], []>} : vector<8x32xf32>, vector<32x128xf32>, vector<8x128xf32> -> vector<8x128xf32>
    %c0_54 = arith.constant 0 : index
    %c0_55 = arith.constant 0 : index
    %c0_56 = arith.constant 0 : index
    %117 = vector.load %arg15[%c0_54, %c0_55, %c0_56] : memref<1x1x128xf32, #tpu.memory_space<vmem>>, vector<1x1x128xf32>
    %118 = vector.shape_cast %117 : vector<1x1x128xf32> to vector<1x128xf32>
    %119 = vector.broadcast %118 : vector<1x128xf32> to vector<8x128xf32>
    %120 = arith.addf %116, %119 : vector<8x128xf32>
    %cst_57 = arith.constant 1.702000e+00 : f32
    %121 = vector.broadcast %cst_57 : f32 to vector<8x128xf32>
    %122 = arith.mulf %121, %120 : vector<8x128xf32>
    %123 = arith.negf %122 : vector<8x128xf32>
    %124 = math.exp %123 : vector<8x128xf32>
    %cst_58 = arith.constant 1.000000e+00 : f32
    %125 = vector.broadcast %cst_58 : f32 to vector<8x128xf32>
    %126 = arith.addf %125, %124 : vector<8x128xf32>
    %127 = arith.divf %125, %126 : vector<8x128xf32>
    %128 = arith.mulf %120, %127 : vector<8x128xf32>
    %c0_59 = arith.constant 0 : index
    %c0_60 = arith.constant 0 : index
    %c0_61 = arith.constant 0 : index
    %129 = vector.load %arg16[%c0_59, %c0_60, %c0_61] : memref<1x128x32xf32, #tpu.memory_space<vmem>>, vector<1x128x32xf32>
    %130 = vector.shape_cast %129 : vector<1x128x32xf32> to vector<128x32xf32>
    %cst_62 = arith.constant dense<0.000000e+00> : vector<8x32xf32>
    %131 = tpu.matmul %128, %130, %cst_62 {dimension_numbers = #tpu.dot_dimension_numbers<[1], [0], [0], [1], [0, 0, 1, 1], [], []>} : vector<8x128xf32>, vector<128x32xf32>, vector<8x32xf32> -> vector<8x32xf32>
    %132 = arith.addf %87, %131 : vector<8x32xf32>
    %c0_63 = arith.constant 0 : index
    %c0_64 = arith.constant 0 : index
    %c0_65 = arith.constant 0 : index
    %133 = vector.load %arg17[%c0_63, %c0_64, %c0_65] : memref<1x1x32xf32, #tpu.memory_space<vmem>>, vector<1x1x32xf32>
    %134 = vector.shape_cast %133 : vector<1x1x32xf32> to vector<1x32xf32>
    %135 = vector.broadcast %134 : vector<1x32xf32> to vector<8x32xf32>
    %136 = arith.addf %132, %135 : vector<8x32xf32>
    %c0_66 = arith.constant 0 : index
    %c0_67 = arith.constant 0 : index
    %137 = vector.load %arg22[%c0_66, %c0_67] : memref<8x32xf32, #tpu.memory_space<vmem>>, vector<8x32xf32>
    tpu.vector_store %arg22[%c0_66, %c0_67], %136 {strides = array<i32>} : memref<8x32xf32, #tpu.memory_space<vmem>>, vector<8x32xf32>,
    %c1_i32 = arith.constant 1 : i32
    %138 = arith.cmpi eq, %arg1, %c1_i32 : i32
    %139 = arith.extui %138 : i1 to i32
    %c0_i32_68 = arith.constant 0 : i32
    %140 = arith.cmpi ne, %139, %c0_i32_68 : i32
    scf.if %140 {
      %c0_69 = arith.constant 0 : index
      %c0_70 = arith.constant 0 : index
      %c0_71 = arith.constant 0 : index
      %141 = vector.load %arg5[%c0_69, %c0_70, %c0_71] : memref<1x1x8xf32, #tpu.memory_space<vmem>>, vector<1x1x8xf32>
      %142 = vector.shape_cast %141 : vector<1x1x8xf32> to vector<1x8xf32>
      %cst_72 = arith.constant dense<0.000000e+00> : vector<1x32xf32>
      %143 = tpu.matmul %142, %136, %cst_72 {dimension_numbers = #tpu.dot_dimension_numbers<[1], [0], [0], [1], [0, 0, 1, 1], [], []>} : vector<1x8xf32>, vector<8x32xf32>, vector<1x32xf32> -> vector<1x32xf32>
      %c0_73 = arith.constant 0 : index
      %c0_74 = arith.constant 0 : index
      %144 = vector.load %arg18[%c0_73, %c0_74] : memref<1x32xf32, #tpu.memory_space<vmem>>, vector<1x32xf32>
      %c0_75 = arith.constant 0 : index
      %c0_76 = arith.constant 0 : index
      %145 = vector.load %arg19[%c0_75, %c0_76] : memref<1x32xf32, #tpu.memory_space<vmem>>, vector<1x32xf32>
      %cst_77 = arith.constant dense<0.000000e+00> : vector<1xf32>
      %146 = vector.multi_reduction <add>, %143, %cst_77 [1] : vector<1x32xf32> to vector<1xf32>
      %147 = vector.shape_cast %146 : vector<1xf32> to vector<1x1xf32>
      %cst_78 = arith.constant 3.200000e+01 : f32
      %148 = vector.broadcast %cst_78 : f32 to vector<1x1xf32>
      %149 = arith.divf %147, %148 : vector<1x1xf32>
      %150 = vector.broadcast %149 : vector<1x1xf32> to vector<1x32xf32>
      %151 = arith.subf %143, %150 : vector<1x32xf32>
      %152 = arith.mulf %151, %151 : vector<1x32xf32>
      %cst_79 = arith.constant dense<0.000000e+00> : vector<1xf32>
      %153 = vector.multi_reduction <add>, %152, %cst_79 [1] : vector<1x32xf32> to vector<1xf32>
      %154 = vector.shape_cast %153 : vector<1xf32> to vector<1x1xf32>
      %cst_80 = arith.constant 3.200000e+01 : f32
      %155 = vector.broadcast %cst_80 : f32 to vector<1x1xf32>
      %156 = arith.divf %154, %155 : vector<1x1xf32>
      %157 = vector.broadcast %149 : vector<1x1xf32> to vector<1x32xf32>
      %158 = arith.subf %143, %157 : vector<1x32xf32>
      %cst_81 = arith.constant 9.99999974E-6 : f32
      %159 = vector.broadcast %cst_81 : f32 to vector<1x1xf32>
      %160 = arith.addf %156, %159 : vector<1x1xf32>
      %161 = math.rsqrt %160 : vector<1x1xf32>
      %162 = vector.broadcast %161 : vector<1x1xf32> to vector<1x32xf32>
      %163 = arith.mulf %158, %162 : vector<1x32xf32>
      %164 = arith.mulf %163, %144 : vector<1x32xf32>
      %165 = arith.addf %164, %145 : vector<1x32xf32>
      %c0_82 = arith.constant 0 : index
      %c0_83 = arith.constant 0 : index
      %166 = vector.load %arg20[%c0_82, %c0_83] : memref<32x64xf32, #tpu.memory_space<vmem>>, vector<32x64xf32>
      %cst_84 = arith.constant dense<0.000000e+00> : vector<1x64xf32>
      %167 = tpu.matmul %165, %166, %cst_84 {dimension_numbers = #tpu.dot_dimension_numbers<[1], [0], [0], [1], [0, 0, 1, 1], [], []>} : vector<1x32xf32>, vector<32x64xf32>, vector<1x64xf32> -> vector<1x64xf32>
      %c0_85 = arith.constant 0 : index
      %c0_86 = arith.constant 0 : index
      %c0_87 = arith.constant 0 : index
      %168 = vector.load %arg21[%c0_85, %c0_86, %c0_87] : memref<1x1x64xf32, #tpu.memory_space<vmem>>, vector<1x1x64xf32>
      %169 = vector.shape_cast %168 : vector<1x1x64xf32> to vector<1x64xf32>
      %170 = vector.shape_cast %167 : vector<1x64xf32> to vector<1x1x64xf32>
      tpu.vector_store %arg21[%c0_85, %c0_86, %c0_87], %170 {strides = array<i32>} : memref<1x1x64xf32, #tpu.memory_space<vmem>>, vector<1x1x64xf32>,
    } else {
    }
    return
  }
  func.func @transform_0(%arg0: i32, %arg1: i32) -> (i32, i32, i32) {
    %c0_i32 = arith.constant 0 : i32
    %c0_i32_0 = arith.constant 0 : i32
    %c0_i32_1 = arith.constant 0 : i32
    return %arg0, %c0_i32, %c0_i32_0 : i32, i32, i32
  }
  func.func @transform_1(%arg0: i32, %arg1: i32) -> (i32, i32) {
    %c0_i32 = arith.constant 0 : i32
    %c0_i32_0 = arith.constant 0 : i32
    %c0_i32_1 = arith.constant 0 : i32
    return %c0_i32, %c0_i32_0 : i32, i32
  }
  func.func @transform_2(%arg0: i32, %arg1: i32) -> (i32, i32) {
    %c0_i32 = arith.constant 0 : i32
    %c0_i32_0 = arith.constant 0 : i32
    %c0_i32_1 = arith.constant 0 : i32
    return %c0_i32, %c0_i32_0 : i32, i32
  }
  func.func @transform_3(%arg0: i32, %arg1: i32) -> (i32, i32, i32) {
    %c0_i32 = arith.constant 0 : i32
    %c0_i32_0 = arith.constant 0 : i32
    %c0_i32_1 = arith.constant 0 : i32
    return %arg0, %c0_i32, %c0_i32_0 : i32, i32, i32
  }
  func.func @transform_4(%arg0: i32, %arg1: i32) -> (i32, i32, i32) {
    %c0_i32 = arith.constant 0 : i32
    %c0_i32_0 = arith.constant 0 : i32
    %c0_i32_1 = arith.constant 0 : i32
    return %arg1, %c0_i32, %c0_i32_0 : i32, i32, i32
  }
  func.func @transform_5(%arg0: i32, %arg1: i32) -> (i32, i32, i32) {
    %c0_i32 = arith.constant 0 : i32
    %c0_i32_0 = arith.constant 0 : i32
    %c0_i32_1 = arith.constant 0 : i32
    return %arg1, %c0_i32, %c0_i32_0 : i32, i32, i32
  }
  func.func @transform_6(%arg0: i32, %arg1: i32) -> (i32, i32, i32) {
    %c0_i32 = arith.constant 0 : i32
    %c0_i32_0 = arith.constant 0 : i32
    %c0_i32_1 = arith.constant 0 : i32
    return %arg1, %c0_i32, %c0_i32_0 : i32, i32, i32
  }
  func.func @transform_7(%arg0: i32, %arg1: i32) -> (i32, i32, i32) {
    %c0_i32 = arith.constant 0 : i32
    %c0_i32_0 = arith.constant 0 : i32
    %c0_i32_1 = arith.constant 0 : i32
    return %arg1, %c0_i32, %c0_i32_0 : i32, i32, i32
  }
  func.func @transform_8(%arg0: i32, %arg1: i32) -> (i32, i32, i32) {
    %c0_i32 = arith.constant 0 : i32
    %c0_i32_0 = arith.constant 0 : i32
    %c0_i32_1 = arith.constant 0 : i32
    return %arg1, %c0_i32, %c0_i32_0 : i32, i32, i32
  }
  func.func @transform_9(%arg0: i32, %arg1: i32) -> (i32, i32, i32) {
    %c0_i32 = arith.constant 0 : i32
    %c0_i32_0 = arith.constant 0 : i32
    %c0_i32_1 = arith.constant 0 : i32
    return %arg1, %c0_i32, %c0_i32_0 : i32, i32, i32
  }
  func.func @transform_10(%arg0: i32, %arg1: i32) -> (i32, i32, i32) {
    %c0_i32 = arith.constant 0 : i32
    %c0_i32_0 = arith.constant 0 : i32
    %c0_i32_1 = arith.constant 0 : i32
    return %arg1, %c0_i32, %c0_i32_0 : i32, i32, i32
  }
  func.func @transform_11(%arg0: i32, %arg1: i32) -> (i32, i32, i32) {
    %c0_i32 = arith.constant 0 : i32
    %c0_i32_0 = arith.constant 0 : i32
    %c0_i32_1 = arith.constant 0 : i32
    return %arg1, %c0_i32, %c0_i32_0 : i32, i32, i32
  }
  func.func @transform_12(%arg0: i32, %arg1: i32) -> (i32, i32, i32) {
    %c0_i32 = arith.constant 0 : i32
    %c0_i32_0 = arith.constant 0 : i32
    %c0_i32_1 = arith.constant 0 : i32
    return %arg1, %c0_i32, %c0_i32_0 : i32, i32, i32
  }
  func.func @transform_13(%arg0: i32, %arg1: i32) -> (i32, i32, i32) {
    %c0_i32 = arith.constant 0 : i32
    %c0_i32_0 = arith.constant 0 : i32
    %c0_i32_1 = arith.constant 0 : i32
    return %arg1, %c0_i32, %c0_i32_0 : i32, i32, i32
  }
  func.func @transform_14(%arg0: i32, %arg1: i32) -> (i32, i32, i32) {
    %c0_i32 = arith.constant 0 : i32
    %c0_i32_0 = arith.constant 0 : i32
    %c0_i32_1 = arith.constant 0 : i32
    return %arg1, %c0_i32, %c0_i32_0 : i32, i32, i32
  }
  func.func @transform_15(%arg0: i32, %arg1: i32) -> (i32, i32, i32) {
    %c0_i32 = arith.constant 0 : i32
    %c0_i32_0 = arith.constant 0 : i32
    %c0_i32_1 = arith.constant 0 : i32
    return %arg1, %c0_i32, %c0_i32_0 : i32, i32, i32
  }
  func.func @transform_16(%arg0: i32, %arg1: i32) -> (i32, i32) {
    %c0_i32 = arith.constant 0 : i32
    %c0_i32_0 = arith.constant 0 : i32
    %c0_i32_1 = arith.constant 0 : i32
    return %c0_i32, %c0_i32_0 : i32, i32
  }
  func.func @transform_17(%arg0: i32, %arg1: i32) -> (i32, i32) {
    %c0_i32 = arith.constant 0 : i32
    %c0_i32_0 = arith.constant 0 : i32
    %c0_i32_1 = arith.constant 0 : i32
    return %c0_i32, %c0_i32_0 : i32, i32
  }
  func.func @transform_18(%arg0: i32, %arg1: i32) -> (i32, i32) {
    %c0_i32 = arith.constant 0 : i32
    %c0_i32_0 = arith.constant 0 : i32
    %c0_i32_1 = arith.constant 0 : i32
    return %c0_i32, %c0_i32_0 : i32, i32
  }
  func.func @transform_19(%arg0: i32, %arg1: i32) -> (i32, i32, i32) {
    %c0_i32 = arith.constant 0 : i32
    %c0_i32_0 = arith.constant 0 : i32
    %c0_i32_1 = arith.constant 0 : i32
    return %arg0, %c0_i32, %c0_i32_0 : i32, i32, i32
  }
}

</mosaic_0001>

<llo_original>
// kernel: tpu_custom_call.1
$region0: #{tpu_custom_call.1}
  #allocation0 [shape = 'u32[]', space=smem, size = 0x4, offset = 0x4, fixed_abs, tag = 'smem constant byte address 0x4 - core index']
  #allocation1 [shape = 'u32[144,128]{1,0:T(1,128)}', space=vmem, size = 0x12000, scoped, tag = 'internal scratch']
  #allocation2 [shape = 'f32[8,32]{1,0:T(8,128)}', space=vmem, size = 0x1000, scoped, tag = 'scratch operand']
  %s0 = inlined_call_operand.vmem [shape: f32[2,8,32], index: 0, kind: input, shape index: {}]
  %s1 = inlined_call_operand.vmem [shape: f32[8,32], index: 1, kind: input, shape index: {}]
  %s2 = inlined_call_operand.vmem [shape: f32[32,8], index: 2, kind: input, shape index: {}]
  %s3 = inlined_call_operand.vmem [shape: f32[2,1,8], index: 3, kind: input, shape index: {}]
  %s4 = inlined_call_operand.vmem [shape: f32[2,1,32], index: 4, kind: input, shape index: {}]
  %s5 = inlined_call_operand.vmem [shape: f32[2,1,32], index: 5, kind: input, shape index: {}]
  %s6 = inlined_call_operand.vmem [shape: f32[2,32,96], index: 6, kind: input, shape index: {}]
  %s7 = inlined_call_operand.vmem [shape: f32[2,1,96], index: 7, kind: input, shape index: {}]
  %s8 = inlined_call_operand.vmem [shape: f32[2,32,32], index: 8, kind: input, shape index: {}]
  %s9 = inlined_call_operand.vmem [shape: f32[2,1,32], index: 9, kind: input, shape index: {}]
  %s10 = inlined_call_operand.vmem [shape: f32[2,1,32], index: 10, kind: input, shape index: {}]
  %s11 = inlined_call_operand.vmem [shape: f32[2,1,32], index: 11, kind: input, shape index: {}]
  %s12 = inlined_call_operand.vmem [shape: f32[2,32,128], index: 12, kind: input, shape index: {}]
  %s13 = inlined_call_operand.vmem [shape: f32[2,1,128], index: 13, kind: input, shape index: {}]
  %s14 = inlined_call_operand.vmem [shape: f32[2,128,32], index: 14, kind: input, shape index: {}]
  %s15 = inlined_call_operand.vmem [shape: f32[2,1,32], index: 15, kind: input, shape index: {}]
  %s16 = inlined_call_operand.vmem [shape: f32[1,32], index: 16, kind: input, shape index: {}]
  %s17 = inlined_call_operand.vmem [shape: f32[1,32], index: 17, kind: input, shape index: {}]
  %s18 = inlined_call_operand.vmem [shape: f32[32,64], index: 18, kind: input, shape index: {}]
  %s19 = inlined_call_operand.hbm [shape: f32[2,1,64], index: 19, kind: output, shape index: {}]
  %s20 = sld [smem:[#allocation0]]
  $region117: #{tpu_custom_call.1} parent=0
    _
  %s22 = ssub.s32 1, %s20
  %s23 = scalar_select 0, %s22, %s20
  $region1: #{tpu_custom_call.1} parent=0
    #allocation3 [shape = 'u8[1024]{0}', space=vmem, size = 0x400, scoped, tag = 'output window, operand 0']
    #allocation4 [shape = 's32[2]{0}', space=sflag, size = 0x8, scoped, tag = 'scoped memory for tpu_custom_call.1']
    %24 = vsyncpa [#allocation4], 0
    %s25 = scalar_lea.sflag [#allocation4], 1
    %26 = vsyncpa %s25, 0
    loop: start=0, step=1, limit=6
    $region2: #{tpu_custom_call.1} parent=1 // loop_pre_header
      _
    $region3: #{tpu_custom_call.1} parent=1 // loop_header
      %s28 = sphi 0, %s32
      %p29 = scmp.ge.s32.totalorder %s28, 6
      %s35 = sphi 0, %s47
      %s36 = sphi 0, %s43
      %s37 = sphi 0, %s35
      %s38 = sphi 0, %s36
      %s39 = sphi 0, %s37
      %s40 = sphi 0, %s38
      %s50 = sphi 0, %s52
      %s53 = sphi 0, %s50
      %s54 = sphi 0, %s53
      %s70 = sphi 0, %s54
      %s74 = sphi 0, %s74
      %s76 = sphi 0, %s74
      %s77 = sphi 0, %s76
      %s91 = sphi 0, %s77
      %s95 = sphi 0, %s95
      %s97 = sphi 0, %s95
      %s98 = sphi 0, %s97
      %s112 = sphi 0, %s98
      %s118 = sphi 0, %s120
      %s121 = sphi 0, %s118
      %s122 = sphi 0, %s121
      %s138 = sphi 0, %s122
      %s144 = sphi 0, %s146
      %s147 = sphi 0, %s144
      %s148 = sphi 0, %s147
      %s164 = sphi 0, %s148
      %s170 = sphi 0, %s172
      %s173 = sphi 0, %s170
      %s174 = sphi 0, %s173
      %s190 = sphi 0, %s174
      %s196 = sphi 0, %s198
      %s199 = sphi 0, %s196
      %s200 = sphi 0, %s199
      %s216 = sphi 0, %s200
      %s222 = sphi 0, %s224
      %s225 = sphi 0, %s222
      %s226 = sphi 0, %s225
      %s242 = sphi 0, %s226
      %s248 = sphi 0, %s250
      %s251 = sphi 0, %s248
      %s252 = sphi 0, %s251
      %s268 = sphi 0, %s252
      %s274 = sphi 0, %s276
      %s277 = sphi 0, %s274
      %s278 = sphi 0, %s277
      %s294 = sphi 0, %s278
      %s300 = sphi 0, %s302
      %s303 = sphi 0, %s300
      %s304 = sphi 0, %s303
      %s320 = sphi 0, %s304
      %s326 = sphi 0, %s328
      %s329 = sphi 0, %s326
      %s330 = sphi 0, %s329
      %s346 = sphi 0, %s330
      %s352 = sphi 0, %s354
      %s355 = sphi 0, %s352
      %s356 = sphi 0, %s355
      %s372 = sphi 0, %s356
      %s378 = sphi 0, %s380
      %s381 = sphi 0, %s378
      %s382 = sphi 0, %s381
      %s398 = sphi 0, %s382
      %s404 = sphi 0, %s406
      %s407 = sphi 0, %s404
      %s408 = sphi 0, %s407
      %s424 = sphi 0, %s408
      %s430 = sphi 0, %s432
      %s433 = sphi 0, %s430
      %s434 = sphi 0, %s433
      %s450 = sphi 0, %s434
      %s454 = sphi 0, %s454
      %s456 = sphi 0, %s454
      %s457 = sphi 0, %s456
      %s471 = sphi 0, %s457
      %s475 = sphi 0, %s475
      %s477 = sphi 0, %s475
      %s478 = sphi 0, %s477
      %s492 = sphi 0, %s478
      %s496 = sphi 0, %s496
      %s498 = sphi 0, %s496
      %s499 = sphi 0, %s498
      %s513 = sphi 0, %s499
      %s519 = sphi 0, %s521
      %s522 = sphi 0, %s519
      %s523 = sphi 0, %s522
      %s539 = sphi 0, %s523
    $region4: #{tpu_custom_call.1} parent=1 // loop_header_branch
      %31 = sbr.rel (%p29) target = $region8
    $region5: #{tpu_custom_call.1} parent=1 // loop_body
      %s33 = ssub.s32 %s28, 1
      %s34 = ssub.s32 %s28, 2
      %s41 = sadd.s32 1, %s36
      %p42 = scmp.ge.s32.totalorder %s41, 2
      %s43 = scalar_select %p42, 0, %s41
      %s44 = sadd.s32 1, %s35
      %s45 = scalar_select %p42, %s44, %s35
      %p46 = scmp.ge.s32.totalorder %s45, 2
      %s47 = scalar_select %p46, 0, %s45
      %s48 = ssub.s32 %s35, %s47
      %p49 = scmp.eq.s32.totalorder %s48, 0
      %s51 = sadd.s32 %s50, 1
      %s52 = scalar_select %p49, %s50, %s51
      %p55 = pneg %p49
      %p56 = scmp.eq.s32.totalorder %s28, 3
      %p57 = por %p55, %p56
      %p58 = scmp.ne.s32.totalorder %s50, %s53
      %p59 = scmp.eq.s32.totalorder %s28, 0
      %p60 = por %p58, %p59
      %p61 = scmp.ne.s32.totalorder %s50, %s53
      %p62 = scmp.eq.s32.totalorder %s33, 3
      %p63 = por %p61, %p62
      %p64 = scmp.ne.s32.totalorder %s53, %s54
      %p65 = scmp.eq.s32.totalorder %s33, 0
      %p66 = por %p64, %p65
      %p67 = scmp.ne.s32.totalorder %s53, %s54
      %p68 = scmp.eq.s32.totalorder %s34, 3
      %p69 = por %p67, %p68
      %p71 = scmp.ne.s32.totalorder %s54, %s70
      %p72 = scmp.eq.s32.totalorder %s34, 0
      %p73 = por %p71, %p72
      %s75 = sadd.s32 %s74, 1
      %p78 = scmp.eq.s32.totalorder %s28, 3
      %p79 = scmp.ne.s32.totalorder %s74, %s76
      %p80 = scmp.eq.s32.totalorder %s28, 0
      %p81 = por %p79, %p80
      %p82 = scmp.ne.s32.totalorder %s74, %s76
      %p83 = scmp.eq.s32.totalorder %s33, 3
      %p84 = por %p82, %p83
      %p85 = scmp.ne.s32.totalorder %s76, %s77
      %p86 = scmp.eq.s32.totalorder %s33, 0
      %p87 = por %p85, %p86
      %p88 = scmp.ne.s32.totalorder %s76, %s77
      %p89 = scmp.eq.s32.totalorder %s34, 3
      %p90 = por %p88, %p89
      %p92 = scmp.ne.s32.totalorder %s77, %s91
      %p93 = scmp.eq.s32.totalorder %s34, 0
      %p94 = por %p92, %p93
      %s96 = sadd.s32 %s95, 1
      %p99 = scmp.eq.s32.totalorder %s28, 3
      %p100 = scmp.ne.s32.totalorder %s95, %s97
      %p101 = scmp.eq.s32.totalorder %s28, 0
      %p102 = por %p100, %p101
      %p103 = scmp.ne.s32.totalorder %s95, %s97
      %p104 = scmp.eq.s32.totalorder %s33, 3
      %p105 = por %p103, %p104
      %p106 = scmp.ne.s32.totalorder %s97, %s98
      %p107 = scmp.eq.s32.totalorder %s33, 0
      %p108 = por %p106, %p107
      %p109 = scmp.ne.s32.totalorder %s97, %s98
      %p110 = scmp.eq.s32.totalorder %s34, 3
      %p111 = por %p109, %p110
      %p113 = scmp.ne.s32.totalorder %s98, %s112
      %p114 = scmp.eq.s32.totalorder %s34, 0
      %p115 = por %p113, %p114
      %s116 = ssub.s32 %s35, %s47
      %p117 = scmp.eq.s32.totalorder %s116, 0
      %s119 = sadd.s32 %s118, 1
      %s120 = scalar_select %p117, %s118, %s119
      %p123 = pneg %p117
      %p124 = scmp.eq.s32.totalorder %s28, 3
      %p125 = por %p123, %p124
      %p126 = scmp.ne.s32.totalorder %s118, %s121
      %p127 = scmp.eq.s32.totalorder %s28, 0
      %p128 = por %p126, %p127
      %p129 = scmp.ne.s32.totalorder %s118, %s121
      %p130 = scmp.eq.s32.totalorder %s33, 3
      %p131 = por %p129, %p130
      %p132 = scmp.ne.s32.totalorder %s121, %s122
      %p133 = scmp.eq.s32.totalorder %s33, 0
      %p134 = por %p132, %p133
      %p135 = scmp.ne.s32.totalorder %s121, %s122
      %p136 = scmp.eq.s32.totalorder %s34, 3
      %p137 = por %p135, %p136
      %p139 = scmp.ne.s32.totalorder %s122, %s138
      %p140 = scmp.eq.s32.totalorder %s34, 0
      %p141 = por %p139, %p140
      %s142 = ssub.s32 %s36, %s43
      %p143 = scmp.eq.s32.totalorder %s142, 0
      %s145 = sadd.s32 %s144, 1
      %s146 = scalar_select %p143, %s144, %s145
      %p149 = pneg %p143
      %p150 = scmp.eq.s32.totalorder %s28, 3
      %p151 = por %p149, %p150
      %p152 = scmp.ne.s32.totalorder %s144, %s147
      %p153 = scmp.eq.s32.totalorder %s28, 0
      %p154 = por %p152, %p153
      %p155 = scmp.ne.s32.totalorder %s144, %s147
      %p156 = scmp.eq.s32.totalorder %s33, 3
      %p157 = por %p155, %p156
      %p158 = scmp.ne.s32.totalorder %s147, %s148
      %p159 = scmp.eq.s32.totalorder %s33, 0
      %p160 = por %p158, %p159
      %p161 = scmp.ne.s32.totalorder %s147, %s148
      %p162 = scmp.eq.s32.totalorder %s34, 3
      %p163 = por %p161, %p162
      %p165 = scmp.ne.s32.totalorder %s148, %s164
      %p166 = scmp.eq.s32.totalorder %s34, 0
      %p167 = por %p165, %p166
      %s168 = ssub.s32 %s36, %s43
      %p169 = scmp.eq.s32.totalorder %s168, 0
      %s171 = sadd.s32 %s170, 1
      %s172 = scalar_select %p169, %s170, %s171
      %p175 = pneg %p169
      %p176 = scmp.eq.s32.totalorder %s28, 3
      %p177 = por %p175, %p176
      %p178 = scmp.ne.s32.totalorder %s170, %s173
      %p179 = scmp.eq.s32.totalorder %s28, 0
      %p180 = por %p178, %p179
      %p181 = scmp.ne.s32.totalorder %s170, %s173
      %p182 = scmp.eq.s32.totalorder %s33, 3
      %p183 = por %p181, %p182
      %p184 = scmp.ne.s32.totalorder %s173, %s174
      %p185 = scmp.eq.s32.totalorder %s33, 0
      %p186 = por %p184, %p185
      %p187 = scmp.ne.s32.totalorder %s173, %s174
      %p188 = scmp.eq.s32.totalorder %s34, 3
      %p189 = por %p187, %p188
      %p191 = scmp.ne.s32.totalorder %s174, %s190
      %p192 = scmp.eq.s32.totalorder %s34, 0
      %p193 = por %p191, %p192
      %s194 = ssub.s32 %s36, %s43
      %p195 = scmp.eq.s32.totalorder %s194, 0
      %s197 = sadd.s32 %s196, 1
      %s198 = scalar_select %p195, %s196, %s197
      %p201 = pneg %p195
      %p202 = scmp.eq.s32.totalorder %s28, 3
      %p203 = por %p201, %p202
      %p204 = scmp.ne.s32.totalorder %s196, %s199
      %p205 = scmp.eq.s32.totalorder %s28, 0
      %p206 = por %p204, %p205
      %p207 = scmp.ne.s32.totalorder %s196, %s199
      %p208 = scmp.eq.s32.totalorder %s33, 3
      %p209 = por %p207, %p208
      %p210 = scmp.ne.s32.totalorder %s199, %s200
      %p211 = scmp.eq.s32.totalorder %s33, 0
      %p212 = por %p210, %p211
      %p213 = scmp.ne.s32.totalorder %s199, %s200
      %p214 = scmp.eq.s32.totalorder %s34, 3
      %p215 = por %p213, %p214
      %p217 = scmp.ne.s32.totalorder %s200, %s216
      %p218 = scmp.eq.s32.totalorder %s34, 0
      %p219 = por %p217, %p218
      %s220 = ssub.s32 %s36, %s43
      %p221 = scmp.eq.s32.totalorder %s220, 0
      %s223 = sadd.s32 %s222, 1
      %s224 = scalar_select %p221, %s222, %s223
      %p227 = pneg %p221
      %p228 = scmp.eq.s32.totalorder %s28, 3
      %p229 = por %p227, %p228
      %p230 = scmp.ne.s32.totalorder %s222, %s225
      %p231 = scmp.eq.s32.totalorder %s28, 0
      %p232 = por %p230, %p231
      %p233 = scmp.ne.s32.totalorder %s222, %s225
      %p234 = scmp.eq.s32.totalorder %s33, 3
      %p235 = por %p233, %p234
      %p236 = scmp.ne.s32.totalorder %s225, %s226
      %p237 = scmp.eq.s32.totalorder %s33, 0
      %p238 = por %p236, %p237
      %p239 = scmp.ne.s32.totalorder %s225, %s226
      %p240 = scmp.eq.s32.totalorder %s34, 3
      %p241 = por %p239, %p240
      %p243 = scmp.ne.s32.totalorder %s226, %s242
      %p244 = scmp.eq.s32.totalorder %s34, 0
      %p245 = por %p243, %p244
      %s246 = ssub.s32 %s36, %s43
      %p247 = scmp.eq.s32.totalorder %s246, 0
      %s249 = sadd.s32 %s248, 1
      %s250 = scalar_select %p247, %s248, %s249
      %p253 = pneg %p247
      %p254 = scmp.eq.s32.totalorder %s28, 3
      %p255 = por %p253, %p254
      %p256 = scmp.ne.s32.totalorder %s248, %s251
      %p257 = scmp.eq.s32.totalorder %s28, 0
      %p258 = por %p256, %p257
      %p259 = scmp.ne.s32.totalorder %s248, %s251
      %p260 = scmp.eq.s32.totalorder %s33, 3
      %p261 = por %p259, %p260
      %p262 = scmp.ne.s32.totalorder %s251, %s252
      %p263 = scmp.eq.s32.totalorder %s33, 0
      %p264 = por %p262, %p263
      %p265 = scmp.ne.s32.totalorder %s251, %s252
      %p266 = scmp.eq.s32.totalorder %s34, 3
      %p267 = por %p265, %p266
      %p269 = scmp.ne.s32.totalorder %s252, %s268
      %p270 = scmp.eq.s32.totalorder %s34, 0
      %p271 = por %p269, %p270
      %s272 = ssub.s32 %s36, %s43
      %p273 = scmp.eq.s32.totalorder %s272, 0
      %s275 = sadd.s32 %s274, 1
      %s276 = scalar_select %p273, %s274, %s275
      %p279 = pneg %p273
      %p280 = scmp.eq.s32.totalorder %s28, 3
      %p281 = por %p279, %p280
      %p282 = scmp.ne.s32.totalorder %s274, %s277
      %p283 = scmp.eq.s32.totalorder %s28, 0
      %p284 = por %p282, %p283
      %p285 = scmp.ne.s32.totalorder %s274, %s277
      %p286 = scmp.eq.s32.totalorder %s33, 3
      %p287 = por %p285, %p286
      %p288 = scmp.ne.s32.totalorder %s277, %s278
      %p289 = scmp.eq.s32.totalorder %s33, 0
      %p290 = por %p288, %p289
      %p291 = scmp.ne.s32.totalorder %s277, %s278
      %p292 = scmp.eq.s32.totalorder %s34, 3
      %p293 = por %p291, %p292
      %p295 = scmp.ne.s32.totalorder %s278, %s294
      %p296 = scmp.eq.s32.totalorder %s34, 0
      %p297 = por %p295, %p296
      %s298 = ssub.s32 %s36, %s43
      %p299 = scmp.eq.s32.totalorder %s298, 0
      %s301 = sadd.s32 %s300, 1
      %s302 = scalar_select %p299, %s300, %s301
      %p305 = pneg %p299
      %p306 = scmp.eq.s32.totalorder %s28, 3
      %p307 = por %p305, %p306
      %p308 = scmp.ne.s32.totalorder %s300, %s303
      %p309 = scmp.eq.s32.totalorder %s28, 0
      %p310 = por %p308, %p309
      %p311 = scmp.ne.s32.totalorder %s300, %s303
      %p312 = scmp.eq.s32.totalorder %s33, 3
      %p313 = por %p311, %p312
      %p314 = scmp.ne.s32.totalorder %s303, %s304
      %p315 = scmp.eq.s32.totalorder %s33, 0
      %p316 = por %p314, %p315
      %p317 = scmp.ne.s32.totalorder %s303, %s304
      %p318 = scmp.eq.s32.totalorder %s34, 3
      %p319 = por %p317, %p318
      %p321 = scmp.ne.s32.totalorder %s304, %s320
      %p322 = scmp.eq.s32.totalorder %s34, 0
      %p323 = por %p321, %p322
      %s324 = ssub.s32 %s36, %s43
      %p325 = scmp.eq.s32.totalorder %s324, 0
      %s327 = sadd.s32 %s326, 1
      %s328 = scalar_select %p325, %s326, %s327
      %p331 = pneg %p325
      %p332 = scmp.eq.s32.totalorder %s28, 3
      %p333 = por %p331, %p332
      %p334 = scmp.ne.s32.totalorder %s326, %s329
      %p335 = scmp.eq.s32.totalorder %s28, 0
      %p336 = por %p334, %p335
      %p337 = scmp.ne.s32.totalorder %s326, %s329
      %p338 = scmp.eq.s32.totalorder %s33, 3
      %p339 = por %p337, %p338
      %p340 = scmp.ne.s32.totalorder %s329, %s330
      %p341 = scmp.eq.s32.totalorder %s33, 0
      %p342 = por %p340, %p341
      %p343 = scmp.ne.s32.totalorder %s329, %s330
      %p344 = scmp.eq.s32.totalorder %s34, 3
      %p345 = por %p343, %p344
      %p347 = scmp.ne.s32.totalorder %s330, %s346
      %p348 = scmp.eq.s32.totalorder %s34, 0
      %p349 = por %p347, %p348
      %s350 = ssub.s32 %s36, %s43
      %p351 = scmp.eq.s32.totalorder %s350, 0
      %s353 = sadd.s32 %s352, 1
      %s354 = scalar_select %p351, %s352, %s353
      %p357 = pneg %p351
      %p358 = scmp.eq.s32.totalorder %s28, 3
      %p359 = por %p357, %p358
      %p360 = scmp.ne.s32.totalorder %s352, %s355
      %p361 = scmp.eq.s32.totalorder %s28, 0
      %p362 = por %p360, %p361
      %p363 = scmp.ne.s32.totalorder %s352, %s355
      %p364 = scmp.eq.s32.totalorder %s33, 3
      %p365 = por %p363, %p364
      %p366 = scmp.ne.s32.totalorder %s355, %s356
      %p367 = scmp.eq.s32.totalorder %s33, 0
      %p368 = por %p366, %p367
      %p369 = scmp.ne.s32.totalorder %s355, %s356
      %p370 = scmp.eq.s32.totalorder %s34, 3
      %p371 = por %p369, %p370
      %p373 = scmp.ne.s32.totalorder %s356, %s372
      %p374 = scmp.eq.s32.totalorder %s34, 0
      %p375 = por %p373, %p374
      %s376 = ssub.s32 %s36, %s43
      %p377 = scmp.eq.s32.totalorder %s376, 0
      %s379 = sadd.s32 %s378, 1
      %s380 = scalar_select %p377, %s378, %s379
      %p383 = pneg %p377
      %p384 = scmp.eq.s32.totalorder %s28, 3
      %p385 = por %p383, %p384
      %p386 = scmp.ne.s32.totalorder %s378, %s381
      %p387 = scmp.eq.s32.totalorder %s28, 0
      %p388 = por %p386, %p387
      %p389 = scmp.ne.s32.totalorder %s378, %s381
      %p390 = scmp.eq.s32.totalorder %s33, 3
      %p391 = por %p389, %p390
      %p392 = scmp.ne.s32.totalorder %s381, %s382
      %p393 = scmp.eq.s32.totalorder %s33, 0
      %p394 = por %p392, %p393
      %p395 = scmp.ne.s32.totalorder %s381, %s382
      %p396 = scmp.eq.s32.totalorder %s34, 3
      %p397 = por %p395, %p396
      %p399 = scmp.ne.s32.totalorder %s382, %s398
      %p400 = scmp.eq.s32.totalorder %s34, 0
      %p401 = por %p399, %p400
      %s402 = ssub.s32 %s36, %s43
      %p403 = scmp.eq.s32.totalorder %s402, 0
      %s405 = sadd.s32 %s404, 1
      %s406 = scalar_select %p403, %s404, %s405
      %p409 = pneg %p403
      %p410 = scmp.eq.s32.totalorder %s28, 3
      %p411 = por %p409, %p410
      %p412 = scmp.ne.s32.totalorder %s404, %s407
      %p413 = scmp.eq.s32.totalorder %s28, 0
      %p414 = por %p412, %p413
      %p415 = scmp.ne.s32.totalorder %s404, %s407
      %p416 = scmp.eq.s32.totalorder %s33, 3
      %p417 = por %p415, %p416
      %p418 = scmp.ne.s32.totalorder %s407, %s408
      %p419 = scmp.eq.s32.totalorder %s33, 0
      %p420 = por %p418, %p419
      %p421 = scmp.ne.s32.totalorder %s407, %s408
      %p422 = scmp.eq.s32.totalorder %s34, 3
      %p423 = por %p421, %p422
      %p425 = scmp.ne.s32.totalorder %s408, %s424
      %p426 = scmp.eq.s32.totalorder %s34, 0
      %p427 = por %p425, %p426
      %s428 = ssub.s32 %s36, %s43
      %p429 = scmp.eq.s32.totalorder %s428, 0
      %s431 = sadd.s32 %s430, 1
      %s432 = scalar_select %p429, %s430, %s431
      %p435 = pneg %p429
      %p436 = scmp.eq.s32.totalorder %s28, 3
      %p437 = por %p435, %p436
      %p438 = scmp.ne.s32.totalorder %s430, %s433
      %p439 = scmp.eq.s32.totalorder %s28, 0
      %p440 = por %p438, %p439
      %p441 = scmp.ne.s32.totalorder %s430, %s433
      %p442 = scmp.eq.s32.totalorder %s33, 3
      %p443 = por %p441, %p442
      %p444 = scmp.ne.s32.totalorder %s433, %s434
      %p445 = scmp.eq.s32.totalorder %s33, 0
      %p446 = por %p444, %p445
      %p447 = scmp.ne.s32.totalorder %s433, %s434
      %p448 = scmp.eq.s32.totalorder %s34, 3
      %p449 = por %p447, %p448
      %p451 = scmp.ne.s32.totalorder %s434, %s450
      %p452 = scmp.eq.s32.totalorder %s34, 0
      %p453 = por %p451, %p452
      %s455 = sadd.s32 %s454, 1
      %p458 = scmp.eq.s32.totalorder %s28, 3
      %p459 = scmp.ne.s32.totalorder %s454, %s456
      %p460 = scmp.eq.s32.totalorder %s28, 0
      %p461 = por %p459, %p460
      %p462 = scmp.ne.s32.totalorder %s454, %s456
      %p463 = scmp.eq.s32.totalorder %s33, 3
      %p464 = por %p462, %p463
      %p465 = scmp.ne.s32.totalorder %s456, %s457
      %p466 = scmp.eq.s32.totalorder %s33, 0
      %p467 = por %p465, %p466
      %p468 = scmp.ne.s32.totalorder %s456, %s457
      %p469 = scmp.eq.s32.totalorder %s34, 3
      %p470 = por %p468, %p469
      %p472 = scmp.ne.s32.totalorder %s457, %s471
      %p473 = scmp.eq.s32.totalorder %s34, 0
      %p474 = por %p472, %p473
      %s476 = sadd.s32 %s475, 1
      %p479 = scmp.eq.s32.totalorder %s28, 3
      %p480 = scmp.ne.s32.totalorder %s475, %s477
      %p481 = scmp.eq.s32.totalorder %s28, 0
      %p482 = por %p480, %p481
      %p483 = scmp.ne.s32.totalorder %s475, %s477
      %p484 = scmp.eq.s32.totalorder %s33, 3
      %p485 = por %p483, %p484
      %p486 = scmp.ne.s32.totalorder %s477, %s478
      %p487 = scmp.eq.s32.totalorder %s33, 0
      %p488 = por %p486, %p487
      %p489 = scmp.ne.s32.totalorder %s477, %s478
      %p490 = scmp.eq.s32.totalorder %s34, 3
      %p491 = por %p489, %p490
      %p493 = scmp.ne.s32.totalorder %s478, %s492
      %p494 = scmp.eq.s32.totalorder %s34, 0
      %p495 = por %p493, %p494
      %s497 = sadd.s32 %s496, 1
      %p500 = scmp.eq.s32.totalorder %s28, 3
      %p501 = scmp.ne.s32.totalorder %s496, %s498
      %p502 = scmp.eq.s32.totalorder %s28, 0
      %p503 = por %p501, %p502
      %p504 = scmp.ne.s32.totalorder %s496, %s498
      %p505 = scmp.eq.s32.totalorder %s33, 3
      %p506 = por %p504, %p505
      %p507 = scmp.ne.s32.totalorder %s498, %s499
      %p508 = scmp.eq.s32.totalorder %s33, 0
      %p509 = por %p507, %p508
      %p510 = scmp.ne.s32.totalorder %s498, %s499
      %p511 = scmp.eq.s32.totalorder %s34, 3
      %p512 = por %p510, %p511
      %p514 = scmp.ne.s32.totalorder %s499, %s513
      %p515 = scmp.eq.s32.totalorder %s34, 0
      %p516 = por %p514, %p515
      %s517 = ssub.s32 %s35, %s47
      %p518 = scmp.eq.s32.totalorder %s517, 0
      %s520 = sadd.s32 %s519, 1
      %s521 = scalar_select %p518, %s519, %s520
      %p524 = pneg %p518
      %p525 = scmp.eq.s32.totalorder %s28, 3
      %p526 = por %p524, %p525
      %p527 = scmp.ne.s32.totalorder %s519, %s522
      %p528 = scmp.eq.s32.totalorder %s28, 0
      %p529 = por %p527, %p528
      %p530 = scmp.ne.s32.totalorder %s519, %s522
      %p531 = scmp.eq.s32.totalorder %s33, 3
      %p532 = por %p530, %p531
      %p533 = scmp.ne.s32.totalorder %s522, %s523
      %p534 = scmp.eq.s32.totalorder %s33, 0
      %p535 = por %p533, %p534
      %p536 = scmp.ne.s32.totalorder %s522, %s523
      %p537 = scmp.eq.s32.totalorder %s34, 3
      %p538 = por %p536, %p537
      %p540 = scmp.ne.s32.totalorder %s523, %s539
      %p541 = scmp.eq.s32.totalorder %s34, 0
      %p542 = por %p540, %p541
      %p543 = scmp.le.s32.totalorder 1, %s28
      %p544 = scmp.lt.s32.totalorder %s28, 5
      %p545 = pnand %p543, %p544
      %p546 = pneg %p545
      // Predicated region
      $region9: #{tpu_custom_call.1} parent=5 // pred_check
        _
      $region10: #{tpu_custom_call.1} parent=5 // pred_check_branch
        %548 = sbr.rel (%p545) target = $region12
      $region11: #{tpu_custom_call.1} parent=5 // pred_region
        %s549 = ssub.s32 %s28, 1
        // Predicated region
        $region13: #{tpu_custom_call.1} parent=11 // pred_check
          %p550 = pneg %p87
        $region14: #{tpu_custom_call.1} parent=11 // pred_check_branch
          %552 = sbr.rel (%p550) target = $region16
        $region15: #{tpu_custom_call.1} parent=11 // pred_region
          _
        $region16: #{tpu_custom_call.1} parent=11 // pred_fallthru
          _
        // Predicated region
        $region17: #{tpu_custom_call.1} parent=11 // pred_check
          %p553 = pneg %p108
        $region18: #{tpu_custom_call.1} parent=11 // pred_check_branch
          %555 = sbr.rel (%p553) target = $region20
        $region19: #{tpu_custom_call.1} parent=11 // pred_region
          _
        $region20: #{tpu_custom_call.1} parent=11 // pred_fallthru
          _
        // Predicated region
        $region21: #{tpu_custom_call.1} parent=11 // pred_check
          %p556 = pneg %p467
        $region22: #{tpu_custom_call.1} parent=11 // pred_check_branch
          %558 = sbr.rel (%p556) target = $region24
        $region23: #{tpu_custom_call.1} parent=11 // pred_region
          _
        $region24: #{tpu_custom_call.1} parent=11 // pred_fallthru
          _
        // Predicated region
        $region25: #{tpu_custom_call.1} parent=11 // pred_check
          %p559 = pneg %p488
        $region26: #{tpu_custom_call.1} parent=11 // pred_check_branch
          %561 = sbr.rel (%p559) target = $region28
        $region27: #{tpu_custom_call.1} parent=11 // pred_region
          _
        $region28: #{tpu_custom_call.1} parent=11 // pred_fallthru
          _
        // Predicated region
        $region29: #{tpu_custom_call.1} parent=11 // pred_check
          %p562 = pneg %p509
        $region30: #{tpu_custom_call.1} parent=11 // pred_check_branch
          %564 = sbr.rel (%p562) target = $region32
        $region31: #{tpu_custom_call.1} parent=11 // pred_region
          _
        $region32: #{tpu_custom_call.1} parent=11 // pred_fallthru
          _
      $region12: #{tpu_custom_call.1} parent=5 // pred_fallthru
        _
      %p565 = scmp.lt.s32.totalorder %s28, 4
      // Predicated region
      $region33: #{tpu_custom_call.1} parent=5 // pred_check
        %p566 = pneg %p565
      $region34: #{tpu_custom_call.1} parent=5 // pred_check_branch
        %568 = sbr.rel (%p566) target = $region36
      $region35: #{tpu_custom_call.1} parent=5 // pred_region
        // Predicated region
        $region37: #{tpu_custom_call.1} parent=35 // pred_check
          %p569 = pneg %p60
        $region38: #{tpu_custom_call.1} parent=35 // pred_check_branch
          %571 = sbr.rel (%p569) target = $region40
        $region39: #{tpu_custom_call.1} parent=35 // pred_region
          %p572 = scmp.lt.s32.totalorder %s35, 1
          %s573 = scalar_select %p572, %s35, 1
          %s574 = smul.addr %s573, 8
          %s575 = scalar_lea.vmem %s0, %s574
        $region40: #{tpu_custom_call.1} parent=35 // pred_fallthru
          _
        // Predicated region
        $region41: #{tpu_custom_call.1} parent=35 // pred_check
          %p576 = pneg %p128
        $region42: #{tpu_custom_call.1} parent=35 // pred_check_branch
          %578 = sbr.rel (%p576) target = $region44
        $region43: #{tpu_custom_call.1} parent=35 // pred_region
          %p579 = scmp.lt.s32.totalorder %s35, 1
          %s580 = scalar_select %p579, %s35, 1
          %s581 = scalar_lea.vmem %s3, %s580
        $region44: #{tpu_custom_call.1} parent=35 // pred_fallthru
          _
        // Predicated region
        $region45: #{tpu_custom_call.1} parent=35 // pred_check
          %p582 = pneg %p154
        $region46: #{tpu_custom_call.1} parent=35 // pred_check_branch
          %584 = sbr.rel (%p582) target = $region48
        $region47: #{tpu_custom_call.1} parent=35 // pred_region
          %p585 = scmp.lt.s32.totalorder %s36, 1
          %s586 = scalar_select %p585, %s36, 1
          %s587 = scalar_lea.vmem %s4, %s586
        $region48: #{tpu_custom_call.1} parent=35 // pred_fallthru
          _
        // Predicated region
        $region49: #{tpu_custom_call.1} parent=35 // pred_check
          %p588 = pneg %p180
        $region50: #{tpu_custom_call.1} parent=35 // pred_check_branch
          %590 = sbr.rel (%p588) target = $region52
        $region51: #{tpu_custom_call.1} parent=35 // pred_region
          %p591 = scmp.lt.s32.totalorder %s36, 1
          %s592 = scalar_select %p591, %s36, 1
          %s593 = scalar_lea.vmem %s5, %s592
        $region52: #{tpu_custom_call.1} parent=35 // pred_fallthru
          _
        // Predicated region
        $region53: #{tpu_custom_call.1} parent=35 // pred_check
          %p594 = pneg %p206
        $region54: #{tpu_custom_call.1} parent=35 // pred_check_branch
          %596 = sbr.rel (%p594) target = $region56
        $region55: #{tpu_custom_call.1} parent=35 // pred_region
          %p597 = scmp.lt.s32.totalorder %s36, 1
          %s598 = scalar_select %p597, %s36, 1
          %s599 = smul.addr %s598, 4
          %s600 = smul.addr %s599, 8
          %s601 = scalar_lea.vmem %s6, %s600
        $region56: #{tpu_custom_call.1} parent=35 // pred_fallthru
          _
        // Predicated region
        $region57: #{tpu_custom_call.1} parent=35 // pred_check
          %p602 = pneg %p232
        $region58: #{tpu_custom_call.1} parent=35 // pred_check_branch
          %604 = sbr.rel (%p602) target = $region60
        $region59: #{tpu_custom_call.1} parent=35 // pred_region
          %p605 = scmp.lt.s32.totalorder %s36, 1
          %s606 = scalar_select %p605, %s36, 1
          %s607 = scalar_lea.vmem %s7, %s606
        $region60: #{tpu_custom_call.1} parent=35 // pred_fallthru
          _
        // Predicated region
        $region61: #{tpu_custom_call.1} parent=35 // pred_check
          %p608 = pneg %p258
        $region62: #{tpu_custom_call.1} parent=35 // pred_check_branch
          %610 = sbr.rel (%p608) target = $region64
        $region63: #{tpu_custom_call.1} parent=35 // pred_region
          %p611 = scmp.lt.s32.totalorder %s36, 1
          %s612 = scalar_select %p611, %s36, 1
          %s613 = smul.addr %s612, 4
          %s614 = smul.addr %s613, 8
          %s615 = scalar_lea.vmem %s8, %s614
        $region64: #{tpu_custom_call.1} parent=35 // pred_fallthru
          _
        // Predicated region
        $region65: #{tpu_custom_call.1} parent=35 // pred_check
          %p616 = pneg %p284
        $region66: #{tpu_custom_call.1} parent=35 // pred_check_branch
          %618 = sbr.rel (%p616) target = $region68
        $region67: #{tpu_custom_call.1} parent=35 // pred_region
          %p619 = scmp.lt.s32.totalorder %s36, 1
          %s620 = scalar_select %p619, %s36, 1
          %s621 = scalar_lea.vmem %s9, %s620
        $region68: #{tpu_custom_call.1} parent=35 // pred_fallthru
          _
        // Predicated region
        $region69: #{tpu_custom_call.1} parent=35 // pred_check
          %p622 = pneg %p310
        $region70: #{tpu_custom_call.1} parent=35 // pred_check_branch
          %624 = sbr.rel (%p622) target = $region72
        $region71: #{tpu_custom_call.1} parent=35 // pred_region
          %p625 = scmp.lt.s32.totalorder %s36, 1
          %s626 = scalar_select %p625, %s36, 1
          %s627 = scalar_lea.vmem %s10, %s626
        $region72: #{tpu_custom_call.1} parent=35 // pred_fallthru
          _
        // Predicated region
        $region73: #{tpu_custom_call.1} parent=35 // pred_check
          %p628 = pneg %p336
        $region74: #{tpu_custom_call.1} parent=35 // pred_check_branch
          %630 = sbr.rel (%p628) target = $region76
        $region75: #{tpu_custom_call.1} parent=35 // pred_region
          %p631 = scmp.lt.s32.totalorder %s36, 1
          %s632 = scalar_select %p631, %s36, 1
          %s633 = scalar_lea.vmem %s11, %s632
        $region76: #{tpu_custom_call.1} parent=35 // pred_fallthru
          _
        // Predicated region
        $region77: #{tpu_custom_call.1} parent=35 // pred_check
          %p634 = pneg %p362
        $region78: #{tpu_custom_call.1} parent=35 // pred_check_branch
          %636 = sbr.rel (%p634) target = $region80
        $region79: #{tpu_custom_call.1} parent=35 // pred_region
          %p637 = scmp.lt.s32.totalorder %s36, 1
          %s638 = scalar_select %p637, %s36, 1
          %s639 = smul.addr %s638, 4
          %s640 = smul.addr %s639, 8
          %s641 = scalar_lea.vmem %s12, %s640
        $region80: #{tpu_custom_call.1} parent=35 // pred_fallthru
          _
        // Predicated region
        $region81: #{tpu_custom_call.1} parent=35 // pred_check
          %p642 = pneg %p388
        $region82: #{tpu_custom_call.1} parent=35 // pred_check_branch
          %644 = sbr.rel (%p642) target = $region84
        $region83: #{tpu_custom_call.1} parent=35 // pred_region
          %p645 = scmp.lt.s32.totalorder %s36, 1
          %s646 = scalar_select %p645, %s36, 1
          %s647 = scalar_lea.vmem %s13, %s646
        $region84: #{tpu_custom_call.1} parent=35 // pred_fallthru
          _
        // Predicated region
        $region85: #{tpu_custom_call.1} parent=35 // pred_check
          %p648 = pneg %p414
        $region86: #{tpu_custom_call.1} parent=35 // pred_check_branch
          %650 = sbr.rel (%p648) target = $region88
        $region87: #{tpu_custom_call.1} parent=35 // pred_region
          %p651 = scmp.lt.s32.totalorder %s36, 1
          %s652 = scalar_select %p651, %s36, 1
          %s653 = smul.addr %s652, 16
          %s654 = smul.addr %s653, 8
          %s655 = scalar_lea.vmem %s14, %s654
        $region88: #{tpu_custom_call.1} parent=35 // pred_fallthru
          _
        // Predicated region
        $region89: #{tpu_custom_call.1} parent=35 // pred_check
          %p656 = pneg %p440
        $region90: #{tpu_custom_call.1} parent=35 // pred_check_branch
          %658 = sbr.rel (%p656) target = $region92
        $region91: #{tpu_custom_call.1} parent=35 // pred_region
          %p659 = scmp.lt.s32.totalorder %s36, 1
          %s660 = scalar_select %p659, %s36, 1
          %s661 = scalar_lea.vmem %s15, %s660
        $region92: #{tpu_custom_call.1} parent=35 // pred_fallthru
          _
      $region36: #{tpu_custom_call.1} parent=5 // pred_fallthru
        _
      %p662 = scmp.le.s32.totalorder 1, %s28
      %p663 = scmp.lt.s32.totalorder %s28, 5
      %p664 = pnand %p662, %p663
      %p665 = pneg %p664
      // Predicated region
      $region93: #{tpu_custom_call.1} parent=5 // pred_check
        _
      $region94: #{tpu_custom_call.1} parent=5 // pred_check_branch
        %667 = sbr.rel (%p664) target = $region96
      $region95: #{tpu_custom_call.1} parent=5 // pred_region
        %s668 = ssub.s32 %s28, 1
        %p669 = scmp.lt.s32.totalorder %s37, 1
        %s670 = scalar_select %p669, %s37, 1
        %s671 = smul.addr %s670, 8
        %s672 = scalar_lea.vmem %s0, %s671
        %p673 = pneg %p66
        %p674 = pneg %p63
        %p675 = pneg %p87
        %p676 = pneg %p84
        %p677 = pneg %p108
        %p678 = pneg %p105
        %p679 = scmp.lt.s32.totalorder %s37, 1
        %s680 = scalar_select %p679, %s37, 1
        %s681 = scalar_lea.vmem %s3, %s680
        %p682 = pneg %p134
        %p683 = pneg %p131
        %p684 = scmp.lt.s32.totalorder %s38, 1
        %s685 = scalar_select %p684, %s38, 1
        %s686 = scalar_lea.vmem %s4, %s685
        %p687 = pneg %p160
        %p688 = pneg %p157
        %p689 = scmp.lt.s32.totalorder %s38, 1
        %s690 = scalar_select %p689, %s38, 1
        %s691 = scalar_lea.vmem %s5, %s690
        %p692 = pneg %p186
        %p693 = pneg %p183
        %p694 = scmp.lt.s32.totalorder %s38, 1
        %s695 = scalar_select %p694, %s38, 1
        %s696 = smul.addr %s695, 4
        %s697 = smul.addr %s696, 8
        %s698 = scalar_lea.vmem %s6, %s697
        %p699 = pneg %p212
        %p700 = pneg %p209
        %p701 = scmp.lt.s32.totalorder %s38, 1
        %s702 = scalar_select %p701, %s38, 1
        %s703 = scalar_lea.vmem %s7, %s702
        %p704 = pneg %p238
        %p705 = pneg %p235
        %p706 = scmp.lt.s32.totalorder %s38, 1
        %s707 = scalar_select %p706, %s38, 1
        %s708 = smul.addr %s707, 4
        %s709 = smul.addr %s708, 8
        %s710 = scalar_lea.vmem %s8, %s709
        %p711 = pneg %p264
        %p712 = pneg %p261
        %p713 = scmp.lt.s32.totalorder %s38, 1
        %s714 = scalar_select %p713, %s38, 1
        %s715 = scalar_lea.vmem %s9, %s714
        %p716 = pneg %p290
        %p717 = pneg %p287
        %p718 = scmp.lt.s32.totalorder %s38, 1
        %s719 = scalar_select %p718, %s38, 1
        %s720 = scalar_lea.vmem %s10, %s719
        %p721 = pneg %p316
        %p722 = pneg %p313
        %p723 = scmp.lt.s32.totalorder %s38, 1
        %s724 = scalar_select %p723, %s38, 1
        %s725 = scalar_lea.vmem %s11, %s724
        %p726 = pneg %p342
        %p727 = pneg %p339
        %p728 = scmp.lt.s32.totalorder %s38, 1
        %s729 = scalar_select %p728, %s38, 1
        %s730 = smul.addr %s729, 4
        %s731 = smul.addr %s730, 8
        %s732 = scalar_lea.vmem %s12, %s731
        %p733 = pneg %p368
        %p734 = pneg %p365
        %p735 = scmp.lt.s32.totalorder %s38, 1
        %s736 = scalar_select %p735, %s38, 1
        %s737 = scalar_lea.vmem %s13, %s736
        %p738 = pneg %p394
        %p739 = pneg %p391
        %p740 = scmp.lt.s32.totalorder %s38, 1
        %s741 = scalar_select %p740, %s38, 1
        %s742 = smul.addr %s741, 16
        %s743 = smul.addr %s742, 8
        %s744 = scalar_lea.vmem %s14, %s743
        %p745 = pneg %p420
        %p746 = pneg %p417
        %p747 = scmp.lt.s32.totalorder %s38, 1
        %s748 = scalar_select %p747, %s38, 1
        %s749 = scalar_lea.vmem %s15, %s748
        %p750 = pneg %p446
        %p751 = pneg %p443
        %p752 = pneg %p467
        %p753 = pneg %p464
        %p754 = pneg %p488
        %p755 = pneg %p485
        %p756 = pneg %p509
        %p757 = pneg %p506
        %p758 = pneg %p535
        %p759 = pneg %p532
        %s760 = sand.u32 %s522, 1
        %s761 = scalar_lea.sflag [#allocation4], %s760
        %s762 = sand.u32 %s522, 1
        %s763 = scalar_lea.vmem [#allocation3], %s762
        %p764 = scmp.lt.s32.totalorder %s37, 1
        %s765 = scalar_select %p764, %s37, 1
        %s766 = smul.addr %s765, 8
        %s767 = scalar_lea.vmem %s0, %s766
        %p768 = scmp.lt.s32.totalorder %s37, 1
        %s769 = scalar_select %p768, %s37, 1
        %s770 = scalar_lea.vmem %s3, %s769
        %p771 = scmp.lt.s32.totalorder %s38, 1
        %s772 = scalar_select %p771, %s38, 1
        %s773 = scalar_lea.vmem %s4, %s772
        %p774 = scmp.lt.s32.totalorder %s38, 1
        %s775 = scalar_select %p774, %s38, 1
        %s776 = scalar_lea.vmem %s5, %s775
        %p777 = scmp.lt.s32.totalorder %s38, 1
        %s778 = scalar_select %p777, %s38, 1
        %s779 = smul.addr %s778, 4
        %s780 = smul.addr %s779, 8
        %s781 = scalar_lea.vmem %s6, %s780
        %p782 = scmp.lt.s32.totalorder %s38, 1
        %s783 = scalar_select %p782, %s38, 1
        %s784 = scalar_lea.vmem %s7, %s783
        %p785 = scmp.lt.s32.totalorder %s38, 1
        %s786 = scalar_select %p785, %s38, 1
        %s787 = smul.addr %s786, 4
        %s788 = smul.addr %s787, 8
        %s789 = scalar_lea.vmem %s8, %s788
        %p790 = scmp.lt.s32.totalorder %s38, 1
        %s791 = scalar_select %p790, %s38, 1
        %s792 = scalar_lea.vmem %s9, %s791
        %p793 = scmp.lt.s32.totalorder %s38, 1
        %s794 = scalar_select %p793, %s38, 1
        %s795 = scalar_lea.vmem %s10, %s794
        %p796 = scmp.lt.s32.totalorder %s38, 1
        %s797 = scalar_select %p796, %s38, 1
        %s798 = scalar_lea.vmem %s11, %s797
        %p799 = scmp.lt.s32.totalorder %s38, 1
        %s800 = scalar_select %p799, %s38, 1
        %s801 = smul.addr %s800, 4
        %s802 = smul.addr %s801, 8
        %s803 = scalar_lea.vmem %s12, %s802
        %p804 = scmp.lt.s32.totalorder %s38, 1
        %s805 = scalar_select %p804, %s38, 1
        %s806 = scalar_lea.vmem %s13, %s805
        %p807 = scmp.lt.s32.totalorder %s38, 1
        %s808 = scalar_select %p807, %s38, 1
        %s809 = smul.addr %s808, 16
        %s810 = smul.addr %s809, 8
        %s811 = scalar_lea.vmem %s14, %s810
        %p812 = scmp.lt.s32.totalorder %s38, 1
        %s813 = scalar_select %p812, %s38, 1
        %s814 = scalar_lea.vmem %s15, %s813
        %p815 = scmp.eq.s32.totalorder %s38, 0
        // Predicated region
        $region97: #{tpu_custom_call.1} parent=95 // pred_check
          %p816 = pneg %p815
        $region98: #{tpu_custom_call.1} parent=95 // pred_check_branch
          %818 = sbr.rel (%p816) target = $region100
        $region99: #{tpu_custom_call.1} parent=95 // pred_region
          %v819 = vld [vmem:[%s767] sm:$0xff]
          %v820 = vld [vmem:[%s1] sm:$0xff]
          %v821 = vadd.f32 %v819, %v820
          %vm822 = vcmask 261120
          %823 = vst.msk [vmem:[#allocation2] sm:$0xff] %vm822, %v821
        $region100: #{tpu_custom_call.1} parent=95 // pred_fallthru
          _
        %v824 = vld [vmem:[#allocation2] sm:$0xff]
        %v825 = vld [vmem:[%s773] sm:$0x1]
        %v826 = vld [vmem:[%s776] sm:$0x1]
        %vm827 = vcmask 261120
        %v828 = vsel %vm827, %v824, 0.0
        %829 = vadd.xlane.f32.xlu0 %v828
        %v830 = vpop.xlane.xlu0 %829
        %v831 = vrcp.pop 32.0
        %v832 = vmul.f32 %v830, %v831
        %v833 = vsub.f32 %v824, %v832
        %v834 = vmul.f32 %v833, %v833
        %v835 = vsel %vm827, %v834, 0.0
        %836 = vadd.xlane.f32.xlu0 %v835
        %v837 = vpop.xlane.xlu0 %836
        %v838 = vmul.f32 %v837, %v831
        %v839 = vadd.f32 %v838, 1e-05
        %v840 = vrsqrt.pop %v839
        %v841 = vmul.f32 %v833, %v840
        %v843 = vlaneseq
        %v844 = vshrl.u32 %v843, 7
        %v845 = vsub.s32 0, %v844
        %v846 = vrot.slane %v825, %v845
        %v848 = vmul.f32 %v841, %v846
        %v850 = vlaneseq
        %v851 = vshrl.u32 %v850, 7
        %v852 = vsub.s32 0, %v851
        %v853 = vrot.slane %v826, %v852
        %v855 = vadd.f32 %v848, %v853
        %v856 = vld [vmem:[%s781] sm:$0xff]
        %v857 = vld [vmem:[%s781 + $0x8] sm:$0xff]
        %v858 = vld [vmem:[%s781 + $0x10] sm:$0xff]
        %v859 = vld [vmem:[%s781 + $0x18] sm:$0xff]
        %v860 = vld [vmem:[%s784] sm:$0x1]
        %v862 = vlaneseq
        %v863 = vshrl.u32 %v862, 7
        %v864 = vsub.s32 0, %v863
        %v865 = vrot.slane %v860, %v864
        %v868 = vsel %vm827, %v855, 0
        %870 = vmatprep.subr.mxu0 0.0
        %871 = vmatpush1.msra.mxu0 %v856
        %872 = vmatprep.subr.mxu0 0.0
        %873 = vmatpush1.msra.mxu0 %v857
        %874 = vmatprep.subr.mxu0 0.0
        %875 = vmatpush1.msra.mxu0 %v858
        %876 = vmatprep.subr.mxu0 0.0
        %877 = vmatpush1.msra.mxu0 %v859
        %878 = vmatprep.subr.mxu0 0.0
        %879 = vmatpush1.msra.mxu0 0.0
        %880 = vmatprep.subr.mxu0 0.0
        %881 = vmatpush1.msra.mxu0 0.0
        %882 = vmatprep.subr.mxu0 0.0
        %883 = vmatpush1.msra.mxu0 0.0
        %884 = vmatprep.subr.mxu0 0.0
        %885 = vmatpush1.msra.mxu0 0.0
        %886 = vmatprep.subr.mxu0 0.0
        %887 = vmatpush1.msra.mxu0 0.0
        %888 = vmatprep.subr.mxu0 0.0
        %889 = vmatpush1.msra.mxu0 0.0
        %890 = vmatprep.subr.mxu0 0.0
        %891 = vmatpush1.msra.mxu0 0.0
        %892 = vmatprep.subr.mxu0 0.0
        %893 = vmatpush1.msra.mxu0 0.0
        %894 = vmatprep.subr.mxu0 0.0
        %895 = vmatpush1.msra.mxu0 0.0
        %896 = vmatprep.subr.mxu0 0.0
        %897 = vmatpush1.msra.mxu0 0.0
        %898 = vmatprep.subr.mxu0 0.0
        %899 = vmatpush1.msra.mxu0 0.0
        %900 = vmatprep.subr.mxu0 0.0
        %901 = vmatpush1.msra.mxu0 0.0
        %902 = vmatprep.subr.mxu0 0.0
        %903 = vmatpush1.msra.mxu0 0.0
        %904 = vmatprep.subr.mxu0 0.0
        %905 = vmatpush1.msra.mxu0 0.0
        %906 = vmatprep.subr.mxu0 0.0
        %907 = vmatpush1.msra.mxu0 0.0
        %908 = vmatprep.subr.mxu0 0.0
        %909 = vmatpush1.msra.mxu0 0.0
        %910 = vmatprep.subr.mxu0 0.0
        %911 = vmatpush1.msra.mxu0 0.0
        %912 = vmatprep.subr.mxu0 0.0
        %913 = vmatpush1.msra.mxu0 0.0
        %914 = vmatprep.subr.mxu0 0.0
        %915 = vmatpush1.msra.mxu0 0.0
        %916 = vmatprep.subr.mxu0 0.0
        %917 = vmatpush1.msra.mxu0 0.0
        %918 = vmatprep.subr.mxu0 0.0
        %919 = vmatpush1.msra.mxu0 0.0
        %920 = vmatprep.subr.mxu0 0.0
        %921 = vmatpush1.msra.mxu0 0.0
        %922 = vmatprep.subr.mxu0 0.0
        %923 = vmatpush1.msra.mxu0 0.0
        %924 = vmatprep.subr.mxu0 0.0
        %925 = vmatpush1.msra.mxu0 0.0
        %926 = vmatprep.subr.mxu0 0.0
        %927 = vmatpush1.msra.mxu0 0.0
        %928 = vmatprep.subr.mxu0 0.0
        %929 = vmatpush1.msra.mxu0 0.0
        %930 = vmatprep.subr.mxu0 0.0
        %931 = vmatpush1.msra.mxu0 0.0
        %932 = vmatprep.subr.mxu0 0.0
        %933 = vmatpush1.msra.mxu0 0.0
        %934 = vmatprep.mubr.f32.mxu0 0.0
        %935 = vmatmul.mubr.f32.gmra.mrb[0].mxu0 %v868
        %v936 = vpop.f32.mrb[0].mxu0
        %v937 = vadd.f32 %v865, %v936
        %v938 = vpop.f32.mrb[0].mxu0
        %939 = vdwg.mxu0
        %v940 = vmul.f32 %v937, 0.35355338
        %942 = vrot.lane.b32.xlu0 %v937, 96
        %v943 = vpop.permute.xlu0 %942
        %vm944 = vcmask 64512
        %v946 = vsel %vm944, %v940, 0
        %v948 = vsel %vm944, %v943, 0
        %950 = vmatprep.subr.mxu0 0.0
        %951 = vmatpush1.xpose.msra.mxu0 %v948
        %952 = vmatprep.subr.mxu0 0.0
        %953 = vmatpush1.xpose.msra.mxu0 0.0
        %954 = vmatprep.subr.mxu0 0.0
        %955 = vmatpush1.xpose.msra.mxu0 0.0
        %956 = vmatprep.subr.mxu0 0.0
        %957 = vmatpush1.xpose.msra.mxu0 0.0
        %958 = vmatprep.subr.mxu0 0.0
        %959 = vmatpush1.xpose.msra.mxu0 0.0
        %960 = vmatprep.subr.mxu0 0.0
        %961 = vmatpush1.xpose.msra.mxu0 0.0
        %962 = vmatprep.subr.mxu0 0.0
        %963 = vmatpush1.xpose.msra.mxu0 0.0
        %964 = vmatprep.subr.mxu0 0.0
        %965 = vmatpush1.xpose.msra.mxu0 0.0
        %966 = vmatprep.subr.mxu0 0.0
        %967 = vmatpush1.xpose.msra.mxu0 0.0
        %968 = vmatprep.subr.mxu0 0.0
        %969 = vmatpush1.xpose.msra.mxu0 0.0
        %970 = vmatprep.subr.mxu0 0.0
        %971 = vmatpush1.xpose.msra.mxu0 0.0
        %972 = vmatprep.subr.mxu0 0.0
        %973 = vmatpush1.xpose.msra.mxu0 0.0
        %974 = vmatprep.subr.mxu0 0.0
        %975 = vmatpush1.xpose.msra.mxu0 0.0
        %976 = vmatprep.subr.mxu0 0.0
        %977 = vmatpush1.xpose.msra.mxu0 0.0
        %978 = vmatprep.subr.mxu0 0.0
        %979 = vmatpush1.xpose.msra.mxu0 0.0
        %980 = vmatprep.subr.mxu0 0.0
        %981 = vmatpush1.xpose.msra.mxu0 0.0
        %982 = vmatprep.subr.mxu0 0.0
        %983 = vmatpush1.xpose.msra.mxu0 0.0
        %984 = vmatprep.subr.mxu0 0.0
        %985 = vmatpush1.xpose.msra.mxu0 0.0
        %986 = vmatprep.subr.mxu0 0.0
        %987 = vmatpush1.xpose.msra.mxu0 0.0
        %988 = vmatprep.subr.mxu0 0.0
        %989 = vmatpush1.xpose.msra.mxu0 0.0
        %990 = vmatprep.subr.mxu0 0.0
        %991 = vmatpush1.xpose.msra.mxu0 0.0
        %992 = vmatprep.subr.mxu0 0.0
        %993 = vmatpush1.xpose.msra.mxu0 0.0
        %994 = vmatprep.subr.mxu0 0.0
        %995 = vmatpush1.xpose.msra.mxu0 0.0
        %996 = vmatprep.subr.mxu0 0.0
        %997 = vmatpush1.xpose.msra.mxu0 0.0
        %998 = vmatprep.subr.mxu0 0.0
        %999 = vmatpush1.xpose.msra.mxu0 0.0
        %1000 = vmatprep.subr.mxu0 0.0
        %1001 = vmatpush1.xpose.msra.mxu0 0.0
        %1002 = vmatprep.subr.mxu0 0.0
        %1003 = vmatpush1.xpose.msra.mxu0 0.0
        %1004 = vmatprep.subr.mxu0 0.0
        %1005 = vmatpush1.xpose.msra.mxu0 0.0
        %1006 = vmatprep.subr.mxu0 0.0
        %1007 = vmatpush1.xpose.msra.mxu0 0.0
        %1008 = vmatprep.subr.mxu0 0.0
        %1009 = vmatpush1.xpose.msra.mxu0 0.0
        %1010 = vmatprep.subr.mxu0 0.0
        %1011 = vmatpush1.xpose.msra.mxu0 0.0
        %1012 = vmatprep.subr.mxu0 0.0
        %1013 = vmatpush1.xpose.msra.mxu0 0.0
        %1014 = vmatprep.mubr.f32.mxu0 0.0
        %1015 = vmatmul.mubr.f32.gmra.mrb[0].mxu0 %v946
        %v1016 = vpop.f32.mrb[0].mxu0
        %v1017 = vadd.f32 0.0, %v1016
        %v1018 = vpop.f32.mrb[0].mxu0
        %1019 = vdwg.mxu0
        %1020 = vrot.lane.b32.xlu0 %v940, 120
        %v1021 = vpop.permute.xlu0 %1020
        %1022 = vrot.lane.b32.xlu0 %v937, 88
        %v1023 = vpop.permute.xlu0 %1022
        %v1024 = vsel %vm944, %v1021, 0
        %v1026 = vsel %vm944, %v1023, 0
        %1028 = vmatprep.subr.mxu0 0.0
        %1029 = vmatpush1.xpose.msra.mxu0 %v1026
        %1030 = vmatprep.subr.mxu0 0.0
        %1031 = vmatpush1.xpose.msra.mxu0 0.0
        %1032 = vmatprep.subr.mxu0 0.0
        %1033 = vmatpush1.xpose.msra.mxu0 0.0
        %1034 = vmatprep.subr.mxu0 0.0
        %1035 = vmatpush1.xpose.msra.mxu0 0.0
        %1036 = vmatprep.subr.mxu0 0.0
        %1037 = vmatpush1.xpose.msra.mxu0 0.0
        %1038 = vmatprep.subr.mxu0 0.0
        %1039 = vmatpush1.xpose.msra.mxu0 0.0
        %1040 = vmatprep.subr.mxu0 0.0
        %1041 = vmatpush1.xpose.msra.mxu0 0.0
        %1042 = vmatprep.subr.mxu0 0.0
        %1043 = vmatpush1.xpose.msra.mxu0 0.0
        %1044 = vmatprep.subr.mxu0 0.0
        %1045 = vmatpush1.xpose.msra.mxu0 0.0
        %1046 = vmatprep.subr.mxu0 0.0
        %1047 = vmatpush1.xpose.msra.mxu0 0.0
        %1048 = vmatprep.subr.mxu0 0.0
        %1049 = vmatpush1.xpose.msra.mxu0 0.0
        %1050 = vmatprep.subr.mxu0 0.0
        %1051 = vmatpush1.xpose.msra.mxu0 0.0
        %1052 = vmatprep.subr.mxu0 0.0
        %1053 = vmatpush1.xpose.msra.mxu0 0.0
        %1054 = vmatprep.subr.mxu0 0.0
        %1055 = vmatpush1.xpose.msra.mxu0 0.0
        %1056 = vmatprep.subr.mxu0 0.0
        %1057 = vmatpush1.xpose.msra.mxu0 0.0
        %1058 = vmatprep.subr.mxu0 0.0
        %1059 = vmatpush1.xpose.msra.mxu0 0.0
        %1060 = vmatprep.subr.mxu0 0.0
        %1061 = vmatpush1.xpose.msra.mxu0 0.0
        %1062 = vmatprep.subr.mxu0 0.0
        %1063 = vmatpush1.xpose.msra.mxu0 0.0
        %1064 = vmatprep.subr.mxu0 0.0
        %1065 = vmatpush1.xpose.msra.mxu0 0.0
        %1066 = vmatprep.subr.mxu0 0.0
        %1067 = vmatpush1.xpose.msra.mxu0 0.0
        %1068 = vmatprep.subr.mxu0 0.0
        %1069 = vmatpush1.xpose.msra.mxu0 0.0
        %1070 = vmatprep.subr.mxu0 0.0
        %1071 = vmatpush1.xpose.msra.mxu0 0.0
        %1072 = vmatprep.subr.mxu0 0.0
        %1073 = vmatpush1.xpose.msra.mxu0 0.0
        %1074 = vmatprep.subr.mxu0 0.0
        %1075 = vmatpush1.xpose.msra.mxu0 0.0
        %1076 = vmatprep.subr.mxu0 0.0
        %1077 = vmatpush1.xpose.msra.mxu0 0.0
        %1078 = vmatprep.subr.mxu0 0.0
        %1079 = vmatpush1.xpose.msra.mxu0 0.0
        %1080 = vmatprep.subr.mxu0 0.0
        %1081 = vmatpush1.xpose.msra.mxu0 0.0
        %1082 = vmatprep.subr.mxu0 0.0
        %1083 = vmatpush1.xpose.msra.mxu0 0.0
        %1084 = vmatprep.subr.mxu0 0.0
        %1085 = vmatpush1.xpose.msra.mxu0 0.0
        %1086 = vmatprep.subr.mxu0 0.0
        %1087 = vmatpush1.xpose.msra.mxu0 0.0
        %1088 = vmatprep.subr.mxu0 0.0
        %1089 = vmatpush1.xpose.msra.mxu0 0.0
        %1090 = vmatprep.subr.mxu0 0.0
        %1091 = vmatpush1.xpose.msra.mxu0 0.0
        %1092 = vmatprep.mubr.f32.mxu0 0.0
        %1093 = vmatmul.mubr.f32.gmra.mrb[0].mxu0 %v1024
        %v1094 = vpop.f32.mrb[0].mxu0
        %v1095 = vadd.f32 0.0, %v1094
        %v1096 = vpop.f32.mrb[0].mxu0
        %1097 = vdwg.mxu0
        %1098 = vrot.lane.b32.xlu0 %v940, 112
        %v1099 = vpop.permute.xlu0 %1098
        %1100 = vrot.lane.b32.xlu0 %v937, 80
        %v1101 = vpop.permute.xlu0 %1100
        %v1102 = vsel %vm944, %v1099, 0
        %v1104 = vsel %vm944, %v1101, 0
        %1106 = vmatprep.subr.mxu0 0.0
        %1107 = vmatpush1.xpose.msra.mxu0 %v1104
        %1108 = vmatprep.subr.mxu0 0.0
        %1109 = vmatpush1.xpose.msra.mxu0 0.0
        %1110 = vmatprep.subr.mxu0 0.0
        %1111 = vmatpush1.xpose.msra.mxu0 0.0
        %1112 = vmatprep.subr.mxu0 0.0
        %1113 = vmatpush1.xpose.msra.mxu0 0.0
        %1114 = vmatprep.subr.mxu0 0.0
        %1115 = vmatpush1.xpose.msra.mxu0 0.0
        %1116 = vmatprep.subr.mxu0 0.0
        %1117 = vmatpush1.xpose.msra.mxu0 0.0
        %1118 = vmatprep.subr.mxu0 0.0
        %1119 = vmatpush1.xpose.msra.mxu0 0.0
        %1120 = vmatprep.subr.mxu0 0.0
        %1121 = vmatpush1.xpose.msra.mxu0 0.0
        %1122 = vmatprep.subr.mxu0 0.0
        %1123 = vmatpush1.xpose.msra.mxu0 0.0
        %1124 = vmatprep.subr.mxu0 0.0
        %1125 = vmatpush1.xpose.msra.mxu0 0.0
        %1126 = vmatprep.subr.mxu0 0.0
        %1127 = vmatpush1.xpose.msra.mxu0 0.0
        %1128 = vmatprep.subr.mxu0 0.0
        %1129 = vmatpush1.xpose.msra.mxu0 0.0
        %1130 = vmatprep.subr.mxu0 0.0
        %1131 = vmatpush1.xpose.msra.mxu0 0.0
        %1132 = vmatprep.subr.mxu0 0.0
        %1133 = vmatpush1.xpose.msra.mxu0 0.0
        %1134 = vmatprep.subr.mxu0 0.0
        %1135 = vmatpush1.xpose.msra.mxu0 0.0
        %1136 = vmatprep.subr.mxu0 0.0
        %1137 = vmatpush1.xpose.msra.mxu0 0.0
        %1138 = vmatprep.subr.mxu0 0.0
        %1139 = vmatpush1.xpose.msra.mxu0 0.0
        %1140 = vmatprep.subr.mxu0 0.0
        %1141 = vmatpush1.xpose.msra.mxu0 0.0
        %1142 = vmatprep.subr.mxu0 0.0
        %1143 = vmatpush1.xpose.msra.mxu0 0.0
        %1144 = vmatprep.subr.mxu0 0.0
        %1145 = vmatpush1.xpose.msra.mxu0 0.0
        %1146 = vmatprep.subr.mxu0 0.0
        %1147 = vmatpush1.xpose.msra.mxu0 0.0
        %1148 = vmatprep.subr.mxu0 0.0
        %1149 = vmatpush1.xpose.msra.mxu0 0.0
        %1150 = vmatprep.subr.mxu0 0.0
        %1151 = vmatpush1.xpose.msra.mxu0 0.0
        %1152 = vmatprep.subr.mxu0 0.0
        %1153 = vmatpush1.xpose.msra.mxu0 0.0
        %1154 = vmatprep.subr.mxu0 0.0
        %1155 = vmatpush1.xpose.msra.mxu0 0.0
        %1156 = vmatprep.subr.mxu0 0.0
        %1157 = vmatpush1.xpose.msra.mxu0 0.0
        %1158 = vmatprep.subr.mxu0 0.0
        %1159 = vmatpush1.xpose.msra.mxu0 0.0
        %1160 = vmatprep.subr.mxu0 0.0
        %1161 = vmatpush1.xpose.msra.mxu0 0.0
        %1162 = vmatprep.subr.mxu0 0.0
        %1163 = vmatpush1.xpose.msra.mxu0 0.0
        %1164 = vmatprep.subr.mxu0 0.0
        %1165 = vmatpush1.xpose.msra.mxu0 0.0
        %1166 = vmatprep.subr.mxu0 0.0
        %1167 = vmatpush1.xpose.msra.mxu0 0.0
        %1168 = vmatprep.subr.mxu0 0.0
        %1169 = vmatpush1.xpose.msra.mxu0 0.0
        %1170 = vmatprep.mubr.f32.mxu0 0.0
        %1171 = vmatmul.mubr.f32.gmra.mrb[0].mxu0 %v1102
        %v1172 = vpop.f32.mrb[0].mxu0
        %v1173 = vadd.f32 0.0, %v1172
        %v1174 = vpop.f32.mrb[0].mxu0
        %1175 = vdwg.mxu0
        %1176 = vrot.lane.b32.xlu0 %v940, 104
        %v1177 = vpop.permute.xlu0 %1176
        %1178 = vrot.lane.b32.xlu0 %v937, 72
        %v1179 = vpop.permute.xlu0 %1178
        %v1180 = vsel %vm944, %v1177, 0
        %v1182 = vsel %vm944, %v1179, 0
        %1184 = vmatprep.subr.mxu0 0.0
        %1185 = vmatpush1.xpose.msra.mxu0 %v1182
        %1186 = vmatprep.subr.mxu0 0.0
        %1187 = vmatpush1.xpose.msra.mxu0 0.0
        %1188 = vmatprep.subr.mxu0 0.0
        %1189 = vmatpush1.xpose.msra.mxu0 0.0
        %1190 = vmatprep.subr.mxu0 0.0
        %1191 = vmatpush1.xpose.msra.mxu0 0.0
        %1192 = vmatprep.subr.mxu0 0.0
        %1193 = vmatpush1.xpose.msra.mxu0 0.0
        %1194 = vmatprep.subr.mxu0 0.0
        %1195 = vmatpush1.xpose.msra.mxu0 0.0
        %1196 = vmatprep.subr.mxu0 0.0
        %1197 = vmatpush1.xpose.msra.mxu0 0.0
        %1198 = vmatprep.subr.mxu0 0.0
        %1199 = vmatpush1.xpose.msra.mxu0 0.0
        %1200 = vmatprep.subr.mxu0 0.0
        %1201 = vmatpush1.xpose.msra.mxu0 0.0
        %1202 = vmatprep.subr.mxu0 0.0
        %1203 = vmatpush1.xpose.msra.mxu0 0.0
        %1204 = vmatprep.subr.mxu0 0.0
        %1205 = vmatpush1.xpose.msra.mxu0 0.0
        %1206 = vmatprep.subr.mxu0 0.0
        %1207 = vmatpush1.xpose.msra.mxu0 0.0
        %1208 = vmatprep.subr.mxu0 0.0
        %1209 = vmatpush1.xpose.msra.mxu0 0.0
        %1210 = vmatprep.subr.mxu0 0.0
        %1211 = vmatpush1.xpose.msra.mxu0 0.0
        %1212 = vmatprep.subr.mxu0 0.0
        %1213 = vmatpush1.xpose.msra.mxu0 0.0
        %1214 = vmatprep.subr.mxu0 0.0
        %1215 = vmatpush1.xpose.msra.mxu0 0.0
        %1216 = vmatprep.subr.mxu0 0.0
        %1217 = vmatpush1.xpose.msra.mxu0 0.0
        %1218 = vmatprep.subr.mxu0 0.0
        %1219 = vmatpush1.xpose.msra.mxu0 0.0
        %1220 = vmatprep.subr.mxu0 0.0
        %1221 = vmatpush1.xpose.msra.mxu0 0.0
        %1222 = vmatprep.subr.mxu0 0.0
        %1223 = vmatpush1.xpose.msra.mxu0 0.0
        %1224 = vmatprep.subr.mxu0 0.0
        %1225 = vmatpush1.xpose.msra.mxu0 0.0
        %1226 = vmatprep.subr.mxu0 0.0
        %1227 = vmatpush1.xpose.msra.mxu0 0.0
        %1228 = vmatprep.subr.mxu0 0.0
        %1229 = vmatpush1.xpose.msra.mxu0 0.0
        %1230 = vmatprep.subr.mxu0 0.0
        %1231 = vmatpush1.xpose.msra.mxu0 0.0
        %1232 = vmatprep.subr.mxu0 0.0
        %1233 = vmatpush1.xpose.msra.mxu0 0.0
        %1234 = vmatprep.subr.mxu0 0.0
        %1235 = vmatpush1.xpose.msra.mxu0 0.0
        %1236 = vmatprep.subr.mxu0 0.0
        %1237 = vmatpush1.xpose.msra.mxu0 0.0
        %1238 = vmatprep.subr.mxu0 0.0
        %1239 = vmatpush1.xpose.msra.mxu0 0.0
        %1240 = vmatprep.subr.mxu0 0.0
        %1241 = vmatpush1.xpose.msra.mxu0 0.0
        %1242 = vmatprep.subr.mxu0 0.0
        %1243 = vmatpush1.xpose.msra.mxu0 0.0
        %1244 = vmatprep.subr.mxu0 0.0
        %1245 = vmatpush1.xpose.msra.mxu0 0.0
        %1246 = vmatprep.subr.mxu0 0.0
        %1247 = vmatpush1.xpose.msra.mxu0 0.0
        %1248 = vmatprep.mubr.f32.mxu0 0.0
        %1249 = vmatmul.mubr.f32.gmra.mrb[0].mxu0 %v1180
        %v1250 = vpop.f32.mrb[0].mxu0
        %v1251 = vadd.f32 0.0, %v1250
        %v1252 = vpop.f32.mrb[0].mxu0
        %1253 = vdwg.mxu0
        %v1254 = vld [vmem:[%s2] sm:$0xff]
        %v1255 = vld [vmem:[%s2 + $0x8] sm:$0xff]
        %v1256 = vld [vmem:[%s2 + $0x10] sm:$0xff]
        %v1257 = vld [vmem:[%s2 + $0x18] sm:$0xff]
        %v1258 = vadd.f32 %v1017, %v1254
        %v1259 = vadd.f32 %v1095, %v1255
        %v1260 = vadd.f32 %v1173, %v1256
        %v1261 = vadd.f32 %v1251, %v1257
        %v1262 = vsel %vm944, %v1258, -inf
        %1263 = vmax.xlane.f32.xlu0 %v1262
        %v1264 = vpop.xlane.xlu0 %1263
        %v1265 = vsel %vm944, %v1259, -inf
        %1266 = vmax.xlane.f32.xlu0 %v1265
        %v1267 = vpop.xlane.xlu0 %1266
        %v1268 = vsel %vm944, %v1260, -inf
        %1269 = vmax.xlane.f32.xlu0 %v1268
        %v1270 = vpop.xlane.xlu0 %1269
        %v1271 = vsel %vm944, %v1261, -inf
        %1272 = vmax.xlane.f32.xlu0 %v1271
        %v1273 = vpop.xlane.xlu0 %1272
        %v1274 = vsub.f32 %v1258, %v1264
        %v1275 = vsub.f32 %v1259, %v1267
        %v1276 = vsub.f32 %v1260, %v1270
        %v1277 = vsub.f32 %v1261, %v1273
        %v1278 = vmul.f32 %v1274, 1.442695
        %v1279 = vpow.pop %v1278
        %v1280 = vmul.f32 %v1275, 1.442695
        %v1281 = vpow.pop %v1280
        %v1282 = vmul.f32 %v1276, 1.442695
        %v1283 = vpow.pop %v1282
        %v1284 = vmul.f32 %v1277, 1.442695
        %v1285 = vpow.pop %v1284
        %v1286 = vsel %vm944, %v1279, 0.0
        %1287 = vadd.xlane.f32.xlu0 %v1286
        %v1288 = vpop.xlane.xlu0 %1287
        %v1289 = vsel %vm944, %v1281, 0.0
        %1290 = vadd.xlane.f32.xlu0 %v1289
        %v1291 = vpop.xlane.xlu0 %1290
        %v1292 = vsel %vm944, %v1283, 0.0
        %1293 = vadd.xlane.f32.xlu0 %v1292
        %v1294 = vpop.xlane.xlu0 %1293
        %v1295 = vsel %vm944, %v1285, 0.0
        %1296 = vadd.xlane.f32.xlu0 %v1295
        %v1297 = vpop.xlane.xlu0 %1296
        %v1298 = vrcp.pop %v1288
        %v1299 = vrcp.pop %v1291
        %v1300 = vrcp.pop %v1294
        %v1301 = vrcp.pop %v1297
        %v1302 = vmul.f32 %v1279, %v1298
        %v1303 = vmul.f32 %v1281, %v1299
        %v1304 = vmul.f32 %v1283, %v1300
        %v1305 = vmul.f32 %v1285, %v1301
        %1306 = vrot.lane.b32.xlu0 %v937, 64
        %v1307 = vpop.permute.xlu0 %1306
        %v1310 = vsel %vm944, %v1302, 0
        %1312 = vmatprep.subr.mxu0 0.0
        %1313 = vmatpush1.msra.mxu0 %v1307
        %1314 = vmatprep.subr.mxu0 0.0
        %1315 = vmatpush1.msra.mxu0 0.0
        %1316 = vmatprep.subr.mxu0 0.0
        %1317 = vmatpush1.msra.mxu0 0.0
        %1318 = vmatprep.subr.mxu0 0.0
        %1319 = vmatpush1.msra.mxu0 0.0
        %1320 = vmatprep.subr.mxu0 0.0
        %1321 = vmatpush1.msra.mxu0 0.0
        %1322 = vmatprep.subr.mxu0 0.0
        %1323 = vmatpush1.msra.mxu0 0.0
        %1324 = vmatprep.subr.mxu0 0.0
        %1325 = vmatpush1.msra.mxu0 0.0
        %1326 = vmatprep.subr.mxu0 0.0
        %1327 = vmatpush1.msra.mxu0 0.0
        %1328 = vmatprep.subr.mxu0 0.0
        %1329 = vmatpush1.msra.mxu0 0.0
        %1330 = vmatprep.subr.mxu0 0.0
        %1331 = vmatpush1.msra.mxu0 0.0
        %1332 = vmatprep.subr.mxu0 0.0
        %1333 = vmatpush1.msra.mxu0 0.0
        %1334 = vmatprep.subr.mxu0 0.0
        %1335 = vmatpush1.msra.mxu0 0.0
        %1336 = vmatprep.subr.mxu0 0.0
        %1337 = vmatpush1.msra.mxu0 0.0
        %1338 = vmatprep.subr.mxu0 0.0
        %1339 = vmatpush1.msra.mxu0 0.0
        %1340 = vmatprep.subr.mxu0 0.0
        %1341 = vmatpush1.msra.mxu0 0.0
        %1342 = vmatprep.subr.mxu0 0.0
        %1343 = vmatpush1.msra.mxu0 0.0
        %1344 = vmatprep.subr.mxu0 0.0
        %1345 = vmatpush1.msra.mxu0 0.0
        %1346 = vmatprep.subr.mxu0 0.0
        %1347 = vmatpush1.msra.mxu0 0.0
        %1348 = vmatprep.subr.mxu0 0.0
        %1349 = vmatpush1.msra.mxu0 0.0
        %1350 = vmatprep.subr.mxu0 0.0
        %1351 = vmatpush1.msra.mxu0 0.0
        %1352 = vmatprep.subr.mxu0 0.0
        %1353 = vmatpush1.msra.mxu0 0.0
        %1354 = vmatprep.subr.mxu0 0.0
        %1355 = vmatpush1.msra.mxu0 0.0
        %1356 = vmatprep.subr.mxu0 0.0
        %1357 = vmatpush1.msra.mxu0 0.0
        %1358 = vmatprep.subr.mxu0 0.0
        %1359 = vmatpush1.msra.mxu0 0.0
        %1360 = vmatprep.subr.mxu0 0.0
        %1361 = vmatpush1.msra.mxu0 0.0
        %1362 = vmatprep.subr.mxu0 0.0
        %1363 = vmatpush1.msra.mxu0 0.0
        %1364 = vmatprep.subr.mxu0 0.0
        %1365 = vmatpush1.msra.mxu0 0.0
        %1366 = vmatprep.subr.mxu0 0.0
        %1367 = vmatpush1.msra.mxu0 0.0
        %1368 = vmatprep.subr.mxu0 0.0
        %1369 = vmatpush1.msra.mxu0 0.0
        %1370 = vmatprep.subr.mxu0 0.0
        %1371 = vmatpush1.msra.mxu0 0.0
        %1372 = vmatprep.subr.mxu0 0.0
        %1373 = vmatpush1.msra.mxu0 0.0
        %1374 = vmatprep.subr.mxu0 0.0
        %1375 = vmatpush1.msra.mxu0 0.0
        %1376 = vmatprep.mubr.f32.mxu0 0.0
        %1377 = vmatmul.mubr.f32.gmra.mrb[0].mxu0 %v1310
        %v1378 = vpop.f32.mrb[0].mxu0
        %v1379 = vadd.f32 0.0, %v1378
        %v1380 = vpop.f32.mrb[0].mxu0
        %1381 = vdwg.mxu0
        %1382 = vrot.lane.b32.xlu0 %v937, 56
        %v1383 = vpop.permute.xlu0 %1382
        %v1386 = vsel %vm944, %v1303, 0
        %1388 = vmatprep.subr.mxu0 0.0
        %1389 = vmatpush1.msra.mxu0 %v1383
        %1390 = vmatprep.subr.mxu0 0.0
        %1391 = vmatpush1.msra.mxu0 0.0
        %1392 = vmatprep.subr.mxu0 0.0
        %1393 = vmatpush1.msra.mxu0 0.0
        %1394 = vmatprep.subr.mxu0 0.0
        %1395 = vmatpush1.msra.mxu0 0.0
        %1396 = vmatprep.subr.mxu0 0.0
        %1397 = vmatpush1.msra.mxu0 0.0
        %1398 = vmatprep.subr.mxu0 0.0
        %1399 = vmatpush1.msra.mxu0 0.0
        %1400 = vmatprep.subr.mxu0 0.0
        %1401 = vmatpush1.msra.mxu0 0.0
        %1402 = vmatprep.subr.mxu0 0.0
        %1403 = vmatpush1.msra.mxu0 0.0
        %1404 = vmatprep.subr.mxu0 0.0
        %1405 = vmatpush1.msra.mxu0 0.0
        %1406 = vmatprep.subr.mxu0 0.0
        %1407 = vmatpush1.msra.mxu0 0.0
        %1408 = vmatprep.subr.mxu0 0.0
        %1409 = vmatpush1.msra.mxu0 0.0
        %1410 = vmatprep.subr.mxu0 0.0
        %1411 = vmatpush1.msra.mxu0 0.0
        %1412 = vmatprep.subr.mxu0 0.0
        %1413 = vmatpush1.msra.mxu0 0.0
        %1414 = vmatprep.subr.mxu0 0.0
        %1415 = vmatpush1.msra.mxu0 0.0
        %1416 = vmatprep.subr.mxu0 0.0
        %1417 = vmatpush1.msra.mxu0 0.0
        %1418 = vmatprep.subr.mxu0 0.0
        %1419 = vmatpush1.msra.mxu0 0.0
        %1420 = vmatprep.subr.mxu0 0.0
        %1421 = vmatpush1.msra.mxu0 0.0
        %1422 = vmatprep.subr.mxu0 0.0
        %1423 = vmatpush1.msra.mxu0 0.0
        %1424 = vmatprep.subr.mxu0 0.0
        %1425 = vmatpush1.msra.mxu0 0.0
        %1426 = vmatprep.subr.mxu0 0.0
        %1427 = vmatpush1.msra.mxu0 0.0
        %1428 = vmatprep.subr.mxu0 0.0
        %1429 = vmatpush1.msra.mxu0 0.0
        %1430 = vmatprep.subr.mxu0 0.0
        %1431 = vmatpush1.msra.mxu0 0.0
        %1432 = vmatprep.subr.mxu0 0.0
        %1433 = vmatpush1.msra.mxu0 0.0
        %1434 = vmatprep.subr.mxu0 0.0
        %1435 = vmatpush1.msra.mxu0 0.0
        %1436 = vmatprep.subr.mxu0 0.0
        %1437 = vmatpush1.msra.mxu0 0.0
        %1438 = vmatprep.subr.mxu0 0.0
        %1439 = vmatpush1.msra.mxu0 0.0
        %1440 = vmatprep.subr.mxu0 0.0
        %1441 = vmatpush1.msra.mxu0 0.0
        %1442 = vmatprep.subr.mxu0 0.0
        %1443 = vmatpush1.msra.mxu0 0.0
        %1444 = vmatprep.subr.mxu0 0.0
        %1445 = vmatpush1.msra.mxu0 0.0
        %1446 = vmatprep.subr.mxu0 0.0
        %1447 = vmatpush1.msra.mxu0 0.0
        %1448 = vmatprep.subr.mxu0 0.0
        %1449 = vmatpush1.msra.mxu0 0.0
        %1450 = vmatprep.subr.mxu0 0.0
        %1451 = vmatpush1.msra.mxu0 0.0
        %1452 = vmatprep.mubr.f32.mxu0 0.0
        %1453 = vmatmul.mubr.f32.gmra.mrb[0].mxu0 %v1386
        %v1454 = vpop.f32.mrb[0].mxu0
        %v1455 = vadd.f32 0.0, %v1454
        %v1456 = vpop.f32.mrb[0].mxu0
        %1457 = vdwg.mxu0
        %1458 = vrot.lane.b32.xlu0 %v937, 48
        %v1459 = vpop.permute.xlu0 %1458
        %v1462 = vsel %vm944, %v1304, 0
        %1464 = vmatprep.subr.mxu0 0.0
        %1465 = vmatpush1.msra.mxu0 %v1459
        %1466 = vmatprep.subr.mxu0 0.0
        %1467 = vmatpush1.msra.mxu0 0.0
        %1468 = vmatprep.subr.mxu0 0.0
        %1469 = vmatpush1.msra.mxu0 0.0
        %1470 = vmatprep.subr.mxu0 0.0
        %1471 = vmatpush1.msra.mxu0 0.0
        %1472 = vmatprep.subr.mxu0 0.0
        %1473 = vmatpush1.msra.mxu0 0.0
        %1474 = vmatprep.subr.mxu0 0.0
        %1475 = vmatpush1.msra.mxu0 0.0
        %1476 = vmatprep.subr.mxu0 0.0
        %1477 = vmatpush1.msra.mxu0 0.0
        %1478 = vmatprep.subr.mxu0 0.0
        %1479 = vmatpush1.msra.mxu0 0.0
        %1480 = vmatprep.subr.mxu0 0.0
        %1481 = vmatpush1.msra.mxu0 0.0
        %1482 = vmatprep.subr.mxu0 0.0
        %1483 = vmatpush1.msra.mxu0 0.0
        %1484 = vmatprep.subr.mxu0 0.0
        %1485 = vmatpush1.msra.mxu0 0.0
        %1486 = vmatprep.subr.mxu0 0.0
        %1487 = vmatpush1.msra.mxu0 0.0
        %1488 = vmatprep.subr.mxu0 0.0
        %1489 = vmatpush1.msra.mxu0 0.0
        %1490 = vmatprep.subr.mxu0 0.0
        %1491 = vmatpush1.msra.mxu0 0.0
        %1492 = vmatprep.subr.mxu0 0.0
        %1493 = vmatpush1.msra.mxu0 0.0
        %1494 = vmatprep.subr.mxu0 0.0
        %1495 = vmatpush1.msra.mxu0 0.0
        %1496 = vmatprep.subr.mxu0 0.0
        %1497 = vmatpush1.msra.mxu0 0.0
        %1498 = vmatprep.subr.mxu0 0.0
        %1499 = vmatpush1.msra.mxu0 0.0
        %1500 = vmatprep.subr.mxu0 0.0
        %1501 = vmatpush1.msra.mxu0 0.0
        %1502 = vmatprep.subr.mxu0 0.0
        %1503 = vmatpush1.msra.mxu0 0.0
        %1504 = vmatprep.subr.mxu0 0.0
        %1505 = vmatpush1.msra.mxu0 0.0
        %1506 = vmatprep.subr.mxu0 0.0
        %1507 = vmatpush1.msra.mxu0 0.0
        %1508 = vmatprep.subr.mxu0 0.0
        %1509 = vmatpush1.msra.mxu0 0.0
        %1510 = vmatprep.subr.mxu0 0.0
        %1511 = vmatpush1.msra.mxu0 0.0
        %1512 = vmatprep.subr.mxu0 0.0
        %1513 = vmatpush1.msra.mxu0 0.0
        %1514 = vmatprep.subr.mxu0 0.0
        %1515 = vmatpush1.msra.mxu0 0.0
        %1516 = vmatprep.subr.mxu0 0.0
        %1517 = vmatpush1.msra.mxu0 0.0
        %1518 = vmatprep.subr.mxu0 0.0
        %1519 = vmatpush1.msra.mxu0 0.0
        %1520 = vmatprep.subr.mxu0 0.0
        %1521 = vmatpush1.msra.mxu0 0.0
        %1522 = vmatprep.subr.mxu0 0.0
        %1523 = vmatpush1.msra.mxu0 0.0
        %1524 = vmatprep.subr.mxu0 0.0
        %1525 = vmatpush1.msra.mxu0 0.0
        %1526 = vmatprep.subr.mxu0 0.0
        %1527 = vmatpush1.msra.mxu0 0.0
        %1528 = vmatprep.mubr.f32.mxu0 0.0
        %1529 = vmatmul.mubr.f32.gmra.mrb[0].mxu0 %v1462
        %v1530 = vpop.f32.mrb[0].mxu0
        %v1531 = vadd.f32 0.0, %v1530
        %v1532 = vpop.f32.mrb[0].mxu0
        %1533 = vdwg.mxu0
        %1534 = vrot.lane.b32.xlu0 %v937, 40
        %v1535 = vpop.permute.xlu0 %1534
        %v1538 = vsel %vm944, %v1305, 0
        %1540 = vmatprep.subr.mxu0 0.0
        %1541 = vmatpush1.msra.mxu0 %v1535
        %1542 = vmatprep.subr.mxu0 0.0
        %1543 = vmatpush1.msra.mxu0 0.0
        %1544 = vmatprep.subr.mxu0 0.0
        %1545 = vmatpush1.msra.mxu0 0.0
        %1546 = vmatprep.subr.mxu0 0.0
        %1547 = vmatpush1.msra.mxu0 0.0
        %1548 = vmatprep.subr.mxu0 0.0
        %1549 = vmatpush1.msra.mxu0 0.0
        %1550 = vmatprep.subr.mxu0 0.0
        %1551 = vmatpush1.msra.mxu0 0.0
        %1552 = vmatprep.subr.mxu0 0.0
        %1553 = vmatpush1.msra.mxu0 0.0
        %1554 = vmatprep.subr.mxu0 0.0
        %1555 = vmatpush1.msra.mxu0 0.0
        %1556 = vmatprep.subr.mxu0 0.0
        %1557 = vmatpush1.msra.mxu0 0.0
        %1558 = vmatprep.subr.mxu0 0.0
        %1559 = vmatpush1.msra.mxu0 0.0
        %1560 = vmatprep.subr.mxu0 0.0
        %1561 = vmatpush1.msra.mxu0 0.0
        %1562 = vmatprep.subr.mxu0 0.0
        %1563 = vmatpush1.msra.mxu0 0.0
        %1564 = vmatprep.subr.mxu0 0.0
        %1565 = vmatpush1.msra.mxu0 0.0
        %1566 = vmatprep.subr.mxu0 0.0
        %1567 = vmatpush1.msra.mxu0 0.0
        %1568 = vmatprep.subr.mxu0 0.0
        %1569 = vmatpush1.msra.mxu0 0.0
        %1570 = vmatprep.subr.mxu0 0.0
        %1571 = vmatpush1.msra.mxu0 0.0
        %1572 = vmatprep.subr.mxu0 0.0
        %1573 = vmatpush1.msra.mxu0 0.0
        %1574 = vmatprep.subr.mxu0 0.0
        %1575 = vmatpush1.msra.mxu0 0.0
        %1576 = vmatprep.subr.mxu0 0.0
        %1577 = vmatpush1.msra.mxu0 0.0
        %1578 = vmatprep.subr.mxu0 0.0
        %1579 = vmatpush1.msra.mxu0 0.0
        %1580 = vmatprep.subr.mxu0 0.0
        %1581 = vmatpush1.msra.mxu0 0.0
        %1582 = vmatprep.subr.mxu0 0.0
        %1583 = vmatpush1.msra.mxu0 0.0
        %1584 = vmatprep.subr.mxu0 0.0
        %1585 = vmatpush1.msra.mxu0 0.0
        %1586 = vmatprep.subr.mxu0 0.0
        %1587 = vmatpush1.msra.mxu0 0.0
        %1588 = vmatprep.subr.mxu0 0.0
        %1589 = vmatpush1.msra.mxu0 0.0
        %1590 = vmatprep.subr.mxu0 0.0
        %1591 = vmatpush1.msra.mxu0 0.0
        %1592 = vmatprep.subr.mxu0 0.0
        %1593 = vmatpush1.msra.mxu0 0.0
        %1594 = vmatprep.subr.mxu0 0.0
        %1595 = vmatpush1.msra.mxu0 0.0
        %1596 = vmatprep.subr.mxu0 0.0
        %1597 = vmatpush1.msra.mxu0 0.0
        %1598 = vmatprep.subr.mxu0 0.0
        %1599 = vmatpush1.msra.mxu0 0.0
        %1600 = vmatprep.subr.mxu0 0.0
        %1601 = vmatpush1.msra.mxu0 0.0
        %1602 = vmatprep.subr.mxu0 0.0
        %1603 = vmatpush1.msra.mxu0 0.0
        %1604 = vmatprep.mubr.f32.mxu0 0.0
        %1605 = vmatmul.mubr.f32.gmra.mrb[0].mxu0 %v1538
        %v1606 = vpop.f32.mrb[0].mxu0
        %v1607 = vadd.f32 0.0, %v1606
        %v1608 = vpop.f32.mrb[0].mxu0
        %1609 = vdwg.mxu0
        %1611 = vrot.lane.b32.xlu0 %v1455, 8
        %v1612 = vpop.permute.xlu0 %1611
        %1615 = vrot.lane.b32.xlu0 %v1531, 16
        %v1616 = vpop.permute.xlu0 %1615
        %1619 = vrot.lane.b32.xlu0 %v1607, 24
        %v1620 = vpop.permute.xlu0 %1619
        %v1622 = vsel %vm944, %v1379, %v1612
        %vm1623 = vcmask 130048
        %v1624 = vsel %vm1623, %v1622, %v1616
        %vm1625 = vcmask 195584
        %v1626 = vsel %vm1625, %v1624, %v1620
        %v1627 = vld [vmem:[%s789] sm:$0xff]
        %v1628 = vld [vmem:[%s789 + $0x8] sm:$0xff]
        %v1629 = vld [vmem:[%s789 + $0x10] sm:$0xff]
        %v1630 = vld [vmem:[%s789 + $0x18] sm:$0xff]
        %v1632 = vsel %vm827, %v1626, 0
        %1634 = vmatprep.subr.mxu0 0.0
        %1635 = vmatpush1.msra.mxu0 %v1627
        %1636 = vmatprep.subr.mxu0 0.0
        %1637 = vmatpush1.msra.mxu0 %v1628
        %1638 = vmatprep.subr.mxu0 0.0
        %1639 = vmatpush1.msra.mxu0 %v1629
        %1640 = vmatprep.subr.mxu0 0.0
        %1641 = vmatpush1.msra.mxu0 %v1630
        %1642 = vmatprep.subr.mxu0 0.0
        %1643 = vmatpush1.msra.mxu0 0.0
        %1644 = vmatprep.subr.mxu0 0.0
        %1645 = vmatpush1.msra.mxu0 0.0
        %1646 = vmatprep.subr.mxu0 0.0
        %1647 = vmatpush1.msra.mxu0 0.0
        %1648 = vmatprep.subr.mxu0 0.0
        %1649 = vmatpush1.msra.mxu0 0.0
        %1650 = vmatprep.subr.mxu0 0.0
        %1651 = vmatpush1.msra.mxu0 0.0
        %1652 = vmatprep.subr.mxu0 0.0
        %1653 = vmatpush1.msra.mxu0 0.0
        %1654 = vmatprep.subr.mxu0 0.0
        %1655 = vmatpush1.msra.mxu0 0.0
        %1656 = vmatprep.subr.mxu0 0.0
        %1657 = vmatpush1.msra.mxu0 0.0
        %1658 = vmatprep.subr.mxu0 0.0
        %1659 = vmatpush1.msra.mxu0 0.0
        %1660 = vmatprep.subr.mxu0 0.0
        %1661 = vmatpush1.msra.mxu0 0.0
        %1662 = vmatprep.subr.mxu0 0.0
        %1663 = vmatpush1.msra.mxu0 0.0
        %1664 = vmatprep.subr.mxu0 0.0
        %1665 = vmatpush1.msra.mxu0 0.0
        %1666 = vmatprep.subr.mxu0 0.0
        %1667 = vmatpush1.msra.mxu0 0.0
        %1668 = vmatprep.subr.mxu0 0.0
        %1669 = vmatpush1.msra.mxu0 0.0
        %1670 = vmatprep.subr.mxu0 0.0
        %1671 = vmatpush1.msra.mxu0 0.0
        %1672 = vmatprep.subr.mxu0 0.0
        %1673 = vmatpush1.msra.mxu0 0.0
        %1674 = vmatprep.subr.mxu0 0.0
        %1675 = vmatpush1.msra.mxu0 0.0
        %1676 = vmatprep.subr.mxu0 0.0
        %1677 = vmatpush1.msra.mxu0 0.0
        %1678 = vmatprep.subr.mxu0 0.0
        %1679 = vmatpush1.msra.mxu0 0.0
        %1680 = vmatprep.subr.mxu0 0.0
        %1681 = vmatpush1.msra.mxu0 0.0
        %1682 = vmatprep.subr.mxu0 0.0
        %1683 = vmatpush1.msra.mxu0 0.0
        %1684 = vmatprep.subr.mxu0 0.0
        %1685 = vmatpush1.msra.mxu0 0.0
        %1686 = vmatprep.subr.mxu0 0.0
        %1687 = vmatpush1.msra.mxu0 0.0
        %1688 = vmatprep.subr.mxu0 0.0
        %1689 = vmatpush1.msra.mxu0 0.0
        %1690 = vmatprep.subr.mxu0 0.0
        %1691 = vmatpush1.msra.mxu0 0.0
        %1692 = vmatprep.subr.mxu0 0.0
        %1693 = vmatpush1.msra.mxu0 0.0
        %1694 = vmatprep.subr.mxu0 0.0
        %1695 = vmatpush1.msra.mxu0 0.0
        %1696 = vmatprep.subr.mxu0 0.0
        %1697 = vmatpush1.msra.mxu0 0.0
        %1698 = vmatprep.mubr.f32.mxu0 0.0
        %1699 = vmatmul.mubr.f32.gmra.mrb[0].mxu0 %v1632
        %v1700 = vpop.f32.mrb[0].mxu0
        %v1701 = vadd.f32 0.0, %v1700
        %v1702 = vpop.f32.mrb[0].mxu0
        %1703 = vdwg.mxu0
        %v1704 = vadd.f32 %v824, %v1701
        %v1705 = vld [vmem:[%s792] sm:$0x1]
        %v1707 = vlaneseq
        %v1708 = vshrl.u32 %v1707, 7
        %v1709 = vsub.s32 0, %v1708
        %v1710 = vrot.slane %v1705, %v1709
        %v1712 = vadd.f32 %v1704, %v1710
        %v1713 = vld [vmem:[%s795] sm:$0x1]
        %v1714 = vld [vmem:[%s798] sm:$0x1]
        %v1715 = vsel %vm827, %v1712, 0.0
        %1716 = vadd.xlane.f32.xlu0 %v1715
        %v1717 = vpop.xlane.xlu0 %1716
        %v1718 = vmul.f32 %v1717, %v831
        %v1719 = vsub.f32 %v1712, %v1718
        %v1720 = vmul.f32 %v1719, %v1719
        %v1721 = vsel %vm827, %v1720, 0.0
        %1722 = vadd.xlane.f32.xlu0 %v1721
        %v1723 = vpop.xlane.xlu0 %1722
        %v1724 = vmul.f32 %v1723, %v831
        %v1725 = vadd.f32 %v1724, 1e-05
        %v1726 = vrsqrt.pop %v1725
        %v1727 = vmul.f32 %v1719, %v1726
        %v1729 = vlaneseq
        %v1730 = vshrl.u32 %v1729, 7
        %v1731 = vsub.s32 0, %v1730
        %v1732 = vrot.slane %v1713, %v1731
        %v1734 = vmul.f32 %v1727, %v1732
        %v1736 = vlaneseq
        %v1737 = vshrl.u32 %v1736, 7
        %v1738 = vsub.s32 0, %v1737
        %v1739 = vrot.slane %v1714, %v1738
        %v1741 = vadd.f32 %v1734, %v1739
        %v1742 = vld [vmem:[%s803] sm:$0xff]
        %v1743 = vld [vmem:[%s803 + $0x8] sm:$0xff]
        %v1744 = vld [vmem:[%s803 + $0x10] sm:$0xff]
        %v1745 = vld [vmem:[%s803 + $0x18] sm:$0xff]
        %v1746 = vld [vmem:[%s806] sm:$0x1]
        %v1748 = vlaneseq
        %v1749 = vshrl.u32 %v1748, 7
        %v1750 = vsub.s32 0, %v1749
        %v1751 = vrot.slane %v1746, %v1750
        %v1754 = vsel %vm827, %v1741, 0
        %1756 = vmatprep.subr.mxu0 0.0
        %1757 = vmatpush1.msra.mxu0 %v1742
        %1758 = vmatprep.subr.mxu0 0.0
        %1759 = vmatpush1.msra.mxu0 %v1743
        %1760 = vmatprep.subr.mxu0 0.0
        %1761 = vmatpush1.msra.mxu0 %v1744
        %1762 = vmatprep.subr.mxu0 0.0
        %1763 = vmatpush1.msra.mxu0 %v1745
        %1764 = vmatprep.subr.mxu0 0.0
        %1765 = vmatpush1.msra.mxu0 0.0
        %1766 = vmatprep.subr.mxu0 0.0
        %1767 = vmatpush1.msra.mxu0 0.0
        %1768 = vmatprep.subr.mxu0 0.0
        %1769 = vmatpush1.msra.mxu0 0.0
        %1770 = vmatprep.subr.mxu0 0.0
        %1771 = vmatpush1.msra.mxu0 0.0
        %1772 = vmatprep.subr.mxu0 0.0
        %1773 = vmatpush1.msra.mxu0 0.0
        %1774 = vmatprep.subr.mxu0 0.0
        %1775 = vmatpush1.msra.mxu0 0.0
        %1776 = vmatprep.subr.mxu0 0.0
        %1777 = vmatpush1.msra.mxu0 0.0
        %1778 = vmatprep.subr.mxu0 0.0
        %1779 = vmatpush1.msra.mxu0 0.0
        %1780 = vmatprep.subr.mxu0 0.0
        %1781 = vmatpush1.msra.mxu0 0.0
        %1782 = vmatprep.subr.mxu0 0.0
        %1783 = vmatpush1.msra.mxu0 0.0
        %1784 = vmatprep.subr.mxu0 0.0
        %1785 = vmatpush1.msra.mxu0 0.0
        %1786 = vmatprep.subr.mxu0 0.0
        %1787 = vmatpush1.msra.mxu0 0.0
        %1788 = vmatprep.subr.mxu0 0.0
        %1789 = vmatpush1.msra.mxu0 0.0
        %1790 = vmatprep.subr.mxu0 0.0
        %1791 = vmatpush1.msra.mxu0 0.0
        %1792 = vmatprep.subr.mxu0 0.0
        %1793 = vmatpush1.msra.mxu0 0.0
        %1794 = vmatprep.subr.mxu0 0.0
        %1795 = vmatpush1.msra.mxu0 0.0
        %1796 = vmatprep.subr.mxu0 0.0
        %1797 = vmatpush1.msra.mxu0 0.0
        %1798 = vmatprep.subr.mxu0 0.0
        %1799 = vmatpush1.msra.mxu0 0.0
        %1800 = vmatprep.subr.mxu0 0.0
        %1801 = vmatpush1.msra.mxu0 0.0
        %1802 = vmatprep.subr.mxu0 0.0
        %1803 = vmatpush1.msra.mxu0 0.0
        %1804 = vmatprep.subr.mxu0 0.0
        %1805 = vmatpush1.msra.mxu0 0.0
        %1806 = vmatprep.subr.mxu0 0.0
        %1807 = vmatpush1.msra.mxu0 0.0
        %1808 = vmatprep.subr.mxu0 0.0
        %1809 = vmatpush1.msra.mxu0 0.0
        %1810 = vmatprep.subr.mxu0 0.0
        %1811 = vmatpush1.msra.mxu0 0.0
        %1812 = vmatprep.subr.mxu0 0.0
        %1813 = vmatpush1.msra.mxu0 0.0
        %1814 = vmatprep.subr.mxu0 0.0
        %1815 = vmatpush1.msra.mxu0 0.0
        %1816 = vmatprep.subr.mxu0 0.0
        %1817 = vmatpush1.msra.mxu0 0.0
        %1818 = vmatprep.subr.mxu0 0.0
        %1819 = vmatpush1.msra.mxu0 0.0
        %1820 = vmatprep.mubr.f32.mxu0 0.0
        %1821 = vmatmul.mubr.f32.gmra.mrb[0].mxu0 %v1754
        %v1822 = vpop.f32.mrb[0].mxu0
        %v1823 = vadd.f32 %v1751, %v1822
        %v1824 = vpop.f32.mrb[0].mxu0
        %1825 = vdwg.mxu0
        %v1826 = vmul.f32 %v1823, 1.702
        %v1827 = vxor.u32 %v1826, 2147483648
        %v1828 = vmul.f32 %v1827, 1.442695
        %v1829 = vpow.pop %v1828
        %v1830 = vadd.f32 %v1829, 1.0
        %v1831 = vrcp.pop %v1830
        %v1832 = vmul.f32 1.0, %v1831
        %v1833 = vmul.f32 %v1823, %v1832
        %v1834 = vld [vmem:[%s811] sm:$0xff]
        %v1835 = vld [vmem:[%s811 + $0x8] sm:$0xff]
        %v1836 = vld [vmem:[%s811 + $0x10] sm:$0xff]
        %v1837 = vld [vmem:[%s811 + $0x18] sm:$0xff]
        %v1838 = vld [vmem:[%s811 + $0x20] sm:$0xff]
        %v1839 = vld [vmem:[%s811 + $0x28] sm:$0xff]
        %v1840 = vld [vmem:[%s811 + $0x30] sm:$0xff]
        %v1841 = vld [vmem:[%s811 + $0x38] sm:$0xff]
        %v1842 = vld [vmem:[%s811 + $0x40] sm:$0xff]
        %v1843 = vld [vmem:[%s811 + $0x48] sm:$0xff]
        %v1844 = vld [vmem:[%s811 + $0x50] sm:$0xff]
        %v1845 = vld [vmem:[%s811 + $0x58] sm:$0xff]
        %v1846 = vld [vmem:[%s811 + $0x60] sm:$0xff]
        %v1847 = vld [vmem:[%s811 + $0x68] sm:$0xff]
        %v1848 = vld [vmem:[%s811 + $0x70] sm:$0xff]
        %v1849 = vld [vmem:[%s811 + $0x78] sm:$0xff]
        %1850 = vmatprep.subr.mxu0 0.0
        %1851 = vmatpush1.msra.mxu0 %v1834
        %1852 = vmatprep.subr.mxu0 0.0
        %1853 = vmatpush1.msra.mxu0 %v1835
        %1854 = vmatprep.subr.mxu0 0.0
        %1855 = vmatpush1.msra.mxu0 %v1836
        %1856 = vmatprep.subr.mxu0 0.0
        %1857 = vmatpush1.msra.mxu0 %v1837
        %1858 = vmatprep.subr.mxu0 0.0
        %1859 = vmatpush1.msra.mxu0 %v1838
        %1860 = vmatprep.subr.mxu0 0.0
        %1861 = vmatpush1.msra.mxu0 %v1839
        %1862 = vmatprep.subr.mxu0 0.0
        %1863 = vmatpush1.msra.mxu0 %v1840
        %1864 = vmatprep.subr.mxu0 0.0
        %1865 = vmatpush1.msra.mxu0 %v1841
        %1866 = vmatprep.subr.mxu0 0.0
        %1867 = vmatpush1.msra.mxu0 %v1842
        %1868 = vmatprep.subr.mxu0 0.0
        %1869 = vmatpush1.msra.mxu0 %v1843
        %1870 = vmatprep.subr.mxu0 0.0
        %1871 = vmatpush1.msra.mxu0 %v1844
        %1872 = vmatprep.subr.mxu0 0.0
        %1873 = vmatpush1.msra.mxu0 %v1845
        %1874 = vmatprep.subr.mxu0 0.0
        %1875 = vmatpush1.msra.mxu0 %v1846
        %1876 = vmatprep.subr.mxu0 0.0
        %1877 = vmatpush1.msra.mxu0 %v1847
        %1878 = vmatprep.subr.mxu0 0.0
        %1879 = vmatpush1.msra.mxu0 %v1848
        %1880 = vmatprep.subr.mxu0 0.0
        %1881 = vmatpush1.msra.mxu0 %v1849
        %1882 = vmatprep.subr.mxu0 0.0
        %1883 = vmatpush1.msra.mxu0 0.0
        %1884 = vmatprep.subr.mxu0 0.0
        %1885 = vmatpush1.msra.mxu0 0.0
        %1886 = vmatprep.subr.mxu0 0.0
        %1887 = vmatpush1.msra.mxu0 0.0
        %1888 = vmatprep.subr.mxu0 0.0
        %1889 = vmatpush1.msra.mxu0 0.0
        %1890 = vmatprep.subr.mxu0 0.0
        %1891 = vmatpush1.msra.mxu0 0.0
        %1892 = vmatprep.subr.mxu0 0.0
        %1893 = vmatpush1.msra.mxu0 0.0
        %1894 = vmatprep.subr.mxu0 0.0
        %1895 = vmatpush1.msra.mxu0 0.0
        %1896 = vmatprep.subr.mxu0 0.0
        %1897 = vmatpush1.msra.mxu0 0.0
        %1898 = vmatprep.subr.mxu0 0.0
        %1899 = vmatpush1.msra.mxu0 0.0
        %1900 = vmatprep.subr.mxu0 0.0
        %1901 = vmatpush1.msra.mxu0 0.0
        %1902 = vmatprep.subr.mxu0 0.0
        %1903 = vmatpush1.msra.mxu0 0.0
        %1904 = vmatprep.subr.mxu0 0.0
        %1905 = vmatpush1.msra.mxu0 0.0
        %1906 = vmatprep.subr.mxu0 0.0
        %1907 = vmatpush1.msra.mxu0 0.0
        %1908 = vmatprep.subr.mxu0 0.0
        %1909 = vmatpush1.msra.mxu0 0.0
        %1910 = vmatprep.subr.mxu0 0.0
        %1911 = vmatpush1.msra.mxu0 0.0
        %1912 = vmatprep.subr.mxu0 0.0
        %1913 = vmatpush1.msra.mxu0 0.0
        %1914 = vmatprep.mubr.f32.mxu0 0.0
        %1915 = vmatmul.mubr.f32.gmra.mrb[0].mxu0 %v1833
        %v1916 = vpop.f32.mrb[0].mxu0
        %v1917 = vadd.f32 0.0, %v1916
        %v1918 = vpop.f32.mrb[0].mxu0
        %1919 = vdwg.mxu0
        %v1920 = vadd.f32 %v1712, %v1917
        %v1921 = vld [vmem:[%s814] sm:$0x1]
        %v1923 = vlaneseq
        %v1924 = vshrl.u32 %v1923, 7
        %v1925 = vsub.s32 0, %v1924
        %v1926 = vrot.slane %v1921, %v1925
        %v1928 = vadd.f32 %v1920, %v1926
        %1929 = vst.msk [vmem:[#allocation2] sm:$0xff] %vm827, %v1928
        %p1930 = scmp.eq.s32.totalorder %s38, 1
        // Predicated region
        $region101: #{tpu_custom_call.1} parent=95 // pred_check
          %p1931 = pneg %p1930
        $region102: #{tpu_custom_call.1} parent=95 // pred_check_branch
          %1933 = sbr.rel (%p1931) target = $region104
        $region103: #{tpu_custom_call.1} parent=95 // pred_region
          %v1934 = vld [vmem:[%s770] sm:$0x1]
          %v1936 = vsel %vm944, %v1934, 0
          %1938 = vmatprep.subr.mxu0 0.0
          %1939 = vmatpush1.msra.mxu0 %v1928
          %1940 = vmatprep.subr.mxu0 0.0
          %1941 = vmatpush1.msra.mxu0 0.0
          %1942 = vmatprep.subr.mxu0 0.0
          %1943 = vmatpush1.msra.mxu0 0.0
          %1944 = vmatprep.subr.mxu0 0.0
          %1945 = vmatpush1.msra.mxu0 0.0
          %1946 = vmatprep.subr.mxu0 0.0
          %1947 = vmatpush1.msra.mxu0 0.0
          %1948 = vmatprep.subr.mxu0 0.0
          %1949 = vmatpush1.msra.mxu0 0.0
          %1950 = vmatprep.subr.mxu0 0.0
          %1951 = vmatpush1.msra.mxu0 0.0
          %1952 = vmatprep.subr.mxu0 0.0
          %1953 = vmatpush1.msra.mxu0 0.0
          %1954 = vmatprep.subr.mxu0 0.0
          %1955 = vmatpush1.msra.mxu0 0.0
          %1956 = vmatprep.subr.mxu0 0.0
          %1957 = vmatpush1.msra.mxu0 0.0
          %1958 = vmatprep.subr.mxu0 0.0
          %1959 = vmatpush1.msra.mxu0 0.0
          %1960 = vmatprep.subr.mxu0 0.0
          %1961 = vmatpush1.msra.mxu0 0.0
          %1962 = vmatprep.subr.mxu0 0.0
          %1963 = vmatpush1.msra.mxu0 0.0
          %1964 = vmatprep.subr.mxu0 0.0
          %1965 = vmatpush1.msra.mxu0 0.0
          %1966 = vmatprep.subr.mxu0 0.0
          %1967 = vmatpush1.msra.mxu0 0.0
          %1968 = vmatprep.subr.mxu0 0.0
          %1969 = vmatpush1.msra.mxu0 0.0
          %1970 = vmatprep.subr.mxu0 0.0
          %1971 = vmatpush1.msra.mxu0 0.0
          %1972 = vmatprep.subr.mxu0 0.0
          %1973 = vmatpush1.msra.mxu0 0.0
          %1974 = vmatprep.subr.mxu0 0.0
          %1975 = vmatpush1.msra.mxu0 0.0
          %1976 = vmatprep.subr.mxu0 0.0
          %1977 = vmatpush1.msra.mxu0 0.0
          %1978 = vmatprep.subr.mxu0 0.0
          %1979 = vmatpush1.msra.mxu0 0.0
          %1980 = vmatprep.subr.mxu0 0.0
          %1981 = vmatpush1.msra.mxu0 0.0
          %1982 = vmatprep.subr.mxu0 0.0
          %1983 = vmatpush1.msra.mxu0 0.0
          %1984 = vmatprep.subr.mxu0 0.0
          %1985 = vmatpush1.msra.mxu0 0.0
          %1986 = vmatprep.subr.mxu0 0.0
          %1987 = vmatpush1.msra.mxu0 0.0
          %1988 = vmatprep.subr.mxu0 0.0
          %1989 = vmatpush1.msra.mxu0 0.0
          %1990 = vmatprep.subr.mxu0 0.0
          %1991 = vmatpush1.msra.mxu0 0.0
          %1992 = vmatprep.subr.mxu0 0.0
          %1993 = vmatpush1.msra.mxu0 0.0
          %1994 = vmatprep.subr.mxu0 0.0
          %1995 = vmatpush1.msra.mxu0 0.0
          %1996 = vmatprep.subr.mxu0 0.0
          %1997 = vmatpush1.msra.mxu0 0.0
          %1998 = vmatprep.subr.mxu0 0.0
          %1999 = vmatpush1.msra.mxu0 0.0
          %2000 = vmatprep.subr.mxu0 0.0
          %2001 = vmatpush1.msra.mxu0 0.0
          %2002 = vmatprep.mubr.f32.mxu0 0.0
          %2003 = vmatmul.mubr.f32.gmra.mrb[0].mxu0 %v1936
          %v2004 = vpop.f32.mrb[0].mxu0
          %v2005 = vadd.f32 0.0, %v2004
          %v2006 = vpop.f32.mrb[0].mxu0
          %2007 = vdwg.mxu0
          %v2008 = vld [vmem:[%s16] sm:$0x1]
          %v2009 = vld [vmem:[%s17] sm:$0x1]
          %vm2010 = vcmask 253952
          %v2011 = vsel %vm2010, %v2005, 0.0
          %2012 = vadd.xlane.f32.xlu0 %v2011
          %v2013 = vpop.xlane.xlu0 %2012
          %v2014 = vmul.f32 %v2013, %v831
          %v2015 = vsub.f32 %v2005, %v2014
          %v2016 = vmul.f32 %v2015, %v2015
          %v2017 = vsel %vm2010, %v2016, 0.0
          %2018 = vadd.xlane.f32.xlu0 %v2017
          %v2019 = vpop.xlane.xlu0 %2018
          %v2020 = vmul.f32 %v2019, %v831
          %v2021 = vadd.f32 %v2020, 1e-05
          %v2022 = vrsqrt.pop %v2021
          %v2023 = vmul.f32 %v2015, %v2022
          %v2024 = vmul.f32 %v2023, %v2008
          %v2025 = vadd.f32 %v2024, %v2009
          %v2026 = vld [vmem:[%s18] sm:$0xff]
          %v2027 = vld [vmem:[%s18 + $0x8] sm:$0xff]
          %v2028 = vld [vmem:[%s18 + $0x10] sm:$0xff]
          %v2029 = vld [vmem:[%s18 + $0x18] sm:$0xff]
          %v2031 = vsel %vm827, %v2025, 0
          %2033 = vmatprep.subr.mxu0 0.0
          %2034 = vmatpush1.msra.mxu0 %v2026
          %2035 = vmatprep.subr.mxu0 0.0
          %2036 = vmatpush1.msra.mxu0 %v2027
          %2037 = vmatprep.subr.mxu0 0.0
          %2038 = vmatpush1.msra.mxu0 %v2028
          %2039 = vmatprep.subr.mxu0 0.0
          %2040 = vmatpush1.msra.mxu0 %v2029
          %2041 = vmatprep.subr.mxu0 0.0
          %2042 = vmatpush1.msra.mxu0 0.0
          %2043 = vmatprep.subr.mxu0 0.0
          %2044 = vmatpush1.msra.mxu0 0.0
          %2045 = vmatprep.subr.mxu0 0.0
          %2046 = vmatpush1.msra.mxu0 0.0
          %2047 = vmatprep.subr.mxu0 0.0
          %2048 = vmatpush1.msra.mxu0 0.0
          %2049 = vmatprep.subr.mxu0 0.0
          %2050 = vmatpush1.msra.mxu0 0.0
          %2051 = vmatprep.subr.mxu0 0.0
          %2052 = vmatpush1.msra.mxu0 0.0
          %2053 = vmatprep.subr.mxu0 0.0
          %2054 = vmatpush1.msra.mxu0 0.0
          %2055 = vmatprep.subr.mxu0 0.0
          %2056 = vmatpush1.msra.mxu0 0.0
          %2057 = vmatprep.subr.mxu0 0.0
          %2058 = vmatpush1.msra.mxu0 0.0
          %2059 = vmatprep.subr.mxu0 0.0
          %2060 = vmatpush1.msra.mxu0 0.0
          %2061 = vmatprep.subr.mxu0 0.0
          %2062 = vmatpush1.msra.mxu0 0.0
          %2063 = vmatprep.subr.mxu0 0.0
          %2064 = vmatpush1.msra.mxu0 0.0
          %2065 = vmatprep.subr.mxu0 0.0
          %2066 = vmatpush1.msra.mxu0 0.0
          %2067 = vmatprep.subr.mxu0 0.0
          %2068 = vmatpush1.msra.mxu0 0.0
          %2069 = vmatprep.subr.mxu0 0.0
          %2070 = vmatpush1.msra.mxu0 0.0
          %2071 = vmatprep.subr.mxu0 0.0
          %2072 = vmatpush1.msra.mxu0 0.0
          %2073 = vmatprep.subr.mxu0 0.0
          %2074 = vmatpush1.msra.mxu0 0.0
          %2075 = vmatprep.subr.mxu0 0.0
          %2076 = vmatpush1.msra.mxu0 0.0
          %2077 = vmatprep.subr.mxu0 0.0
          %2078 = vmatpush1.msra.mxu0 0.0
          %2079 = vmatprep.subr.mxu0 0.0
          %2080 = vmatpush1.msra.mxu0 0.0
          %2081 = vmatprep.subr.mxu0 0.0
          %2082 = vmatpush1.msra.mxu0 0.0
          %2083 = vmatprep.subr.mxu0 0.0
          %2084 = vmatpush1.msra.mxu0 0.0
          %2085 = vmatprep.subr.mxu0 0.0
          %2086 = vmatpush1.msra.mxu0 0.0
          %2087 = vmatprep.subr.mxu0 0.0
          %2088 = vmatpush1.msra.mxu0 0.0
          %2089 = vmatprep.subr.mxu0 0.0
          %2090 = vmatpush1.msra.mxu0 0.0
          %2091 = vmatprep.subr.mxu0 0.0
          %2092 = vmatpush1.msra.mxu0 0.0
          %2093 = vmatprep.subr.mxu0 0.0
          %2094 = vmatpush1.msra.mxu0 0.0
          %2095 = vmatprep.subr.mxu0 0.0
          %2096 = vmatpush1.msra.mxu0 0.0
          %2097 = vmatprep.mubr.f32.mxu0 0.0
          %2098 = vmatmul.mubr.f32.gmra.mrb[0].mxu0 %v2031
          %v2099 = vpop.f32.mrb[0].mxu0
          %v2100 = vadd.f32 0.0, %v2099
          %v2101 = vpop.f32.mrb[0].mxu0
          %2102 = vdwg.mxu0
          %vm2103 = vcmask 516096
          %2104 = vst.msk [vmem:[%s763] sm:$0x1] %vm2103, %v2100
        $region104: #{tpu_custom_call.1} parent=95 // pred_fallthru
          _
        %s2105 = sand.u32 %s522, 1
        %s2106 = scalar_lea.sflag [#allocation4], %s2105
        %s2107 = sand.u32 %s522, 1
        %s2108 = scalar_lea.vmem [#allocation3], %s2107
        // Predicated region
        $region105: #{tpu_custom_call.1} parent=95 // pred_check
          %p2109 = pneg %p532
        $region106: #{tpu_custom_call.1} parent=95 // pred_check_branch
          %2111 = sbr.rel (%p2109) target = $region108
        $region107: #{tpu_custom_call.1} parent=95 // pred_region
          %s2113 = ssub.s32 16, 16
          %2114 = vsyncadd %s2106, %s2113
          %s2115 = smul.addr %s37, 16
          %s2116 = scalar_lea.hbm %s19, %s2115
          %s2118 = sshll.u32 %s2108, 4
          %s2119 = int_to_ptr.vmem [resolvable:$true] %s2118
          %2121 = dma.vmem_to_hbm [thread:$0]  %s2119, 16, %s2116, %s2106
        $region108: #{tpu_custom_call.1} parent=95 // pred_fallthru
          _
      $region96: #{tpu_custom_call.1} parent=5 // pred_fallthru
        _
      %p2122 = scmp.le.s32.totalorder 2, %s28
      // Predicated region
      $region109: #{tpu_custom_call.1} parent=5 // pred_check
        %p2123 = pneg %p2122
      $region110: #{tpu_custom_call.1} parent=5 // pred_check_branch
        %2125 = sbr.rel (%p2123) target = $region112
      $region111: #{tpu_custom_call.1} parent=5 // pred_region
        %s2126 = ssub.s32 %s28, 2
        // Predicated region
        $region113: #{tpu_custom_call.1} parent=111 // pred_check
          %p2127 = pneg %p538
        $region114: #{tpu_custom_call.1} parent=111 // pred_check_branch
          %2129 = sbr.rel (%p2127) target = $region116
        $region115: #{tpu_custom_call.1} parent=111 // pred_region
          %s2130 = sand.u32 %s523, 1
          %s2131 = scalar_lea.sflag [#allocation4], %s2130
          %s2132 = sand.u32 %s523, 1
          %s2133 = scalar_lea.vmem [#allocation3], %s2132
          %2134 = dma.done %s2131, 16
        $region116: #{tpu_custom_call.1} parent=111 // pred_fallthru
          _
      $region112: #{tpu_custom_call.1} parent=5 // pred_fallthru
        _
    $region6: #{tpu_custom_call.1} parent=1 // loop_footer
      %s32 = sadd.s32 1, %s28
    $region7: #{tpu_custom_call.1} parent=1 // loop_footer_branch
      %27 = sbr.rel target = $region3
    $region8: #{tpu_custom_call.1} parent=1 // loop_exit
      _
    %2135 = vsyncpa [#allocation4], 1
    %s2136 = scalar_lea.sflag [#allocation4], 1
    %2137 = vsyncpa %s2136, 1

</llo_original>
